<compile_context>
chip_gen: v7x
topology: tpu7x:2x2x1
jax: 0.10.0
libtpu: 0.0.40
codegen_flags: <defaults>
</compile_context>

<pallas_src>
import numpy as np
import jax
import jax.numpy as jnp
from jax.experimental import pallas as pl
from jax.experimental.pallas import tpu as pltpu

# Model hyperparameters (PyTorch EventPredictor defaults)
NEVENTS = 5
EMB_DIM = 5
INNER_DIM = 30
FILTER_INNER_DIM = 30
DEPTH = 5            # chain depth
FILTER_DEPTH = 5     # cond_filter depth
VOCAB = NEVENTS + 2  # 7
CHAIN_DIM = INNER_DIM + EMB_DIM  # 35
BN_EPS = 1e-5


def event_predictor_kernel(
    ev_idx_ref, cond_idx_ref,
    w_ev_fold_ref, w_cond_fold_ref, f_b_in_ref,
    ev_tab_pad_ref,
    f_res_w_ref, f_res_b_ref, f_res_g_ref, f_res_beta_ref,
    f_w_out_pad_ref, f_b_out_pad_ref,
    c_res_w_ref, c_res_b_ref, c_res_g_ref, c_res_beta_ref,
    c_w_fin_ref, c_b_fin_ref,
    out_ref,
):
    """Whole forward pass in one kernel (everything resident in VMEM)."""
    batch = ev_idx_ref.shape[0]          # B (multiple of 8 -> trivial reshapes)
    ncb = cond_idx_ref.shape[0]          # NC * B
    n_cond = ncb // batch
    fdim = w_cond_fold_ref.shape[1]      # FILTER_INNER_DIM
    cdim = f_w_out_pad_ref.shape[1]      # CHAIN_DIM (= EMB_DIM + INNER_DIM)
    inv_b = 1.0 / batch
    bf16 = jnp.bfloat16

    # ---- in-kernel one-hot (index == iota); 0/1 is exact in bf16 ----
    iota_v = jax.lax.broadcasted_iota(jnp.int32, (1, VOCAB), 1)
    ev_oh = (ev_idx_ref[...] == iota_v).astype(bf16)            # (B, V)
    cond_oh = (cond_idx_ref[...] == iota_v).astype(bf16)        # (NC*B, V)

    def bn_fold(z3, gamma, beta):
        """Train-mode BatchNorm1d over axis=1 of a (G, B, D) view.

        Single merged cross-sublane reduce of [z | z*z] and a folded affine:
        returns z*a + c with a = rstd*gamma, c = beta - mean*a.
        Single-pass variance (E[z^2] - E[z]^2): if cancellation ever bites,
        subtract a per-column shift (e.g. row 0) before accumulating sums.
        """
        d = z3.shape[-1]
        stats = jnp.sum(jnp.concatenate([z3, z3 * z3], axis=-1),
                        axis=1, keepdims=True) * inv_b           # (G, 1, 2D)
        mean = stats[..., :d]
        var = stats[..., d:] - mean * mean
        a = jax.lax.rsqrt(var + BN_EPS) * gamma                  # (G, 1, D)
        c = beta - mean * a
        return z3 * a + c

    # ---- cond_filter: all conditions fused into the matmul M dimension ----
    # Embedding tables already folded into these weights (wrapper glue); the
    # two ev_oh dots are independent of each other -> overlap on the MXU.
    ev_part = jnp.dot(ev_oh, w_ev_fold_ref[...],
                      preferred_element_type=jnp.float32) + f_b_in_ref[...]   # (B, F)
    ev_emb_pad = jnp.dot(ev_oh, ev_tab_pad_ref[...],
                         preferred_element_type=jnp.float32)                  # (B, 35)
    h = jnp.dot(cond_oh, w_cond_fold_ref[...],
                preferred_element_type=jnp.float32)                           # (NC*B, F)
    h = (h.reshape(n_cond, batch, fdim) + ev_part).reshape(ncb, fdim)

    # Residual filter blocks — per-layer Ref indexing (no hoisted stacks).
    for r in range(f_res_w_ref.shape[0]):                       # statically unrolled
        z = jnp.dot(h.astype(bf16), f_res_w_ref[r],
                    preferred_element_type=jnp.float32) + f_res_b_ref[r]      # (NC*B, F)
        z3 = jnp.maximum(z, 0.0).reshape(n_cond, batch, fdim)
        h = bn_fold(z3, f_res_g_ref[r], f_res_beta_ref[r]).reshape(ncb, fdim) + h

    # f_w_out is pre-padded with EMB_DIM leading zero columns, so f_out lands
    # directly in chain lanes [E, E+I) — no lane concatenate needed below.
    f_out = jnp.dot(h.astype(bf16), f_w_out_pad_ref[...],
                    preferred_element_type=jnp.float32) + f_b_out_pad_ref[...]  # (NC*B, 35)
    base = jnp.sum(f_out.reshape(n_cond, batch, cdim), axis=0)                  # (B, 35)

    # ---- chain ----
    x = ev_emb_pad + base                                                        # (B, 35)
    for r in range(c_res_w_ref.shape[0]):
        z = jnp.dot(x.astype(bf16), c_res_w_ref[r],
                    preferred_element_type=jnp.float32) + c_res_b_ref[r]         # (B, 35)
        z3 = jnp.maximum(z, 0.0).reshape(1, batch, cdim)
        x = bn_fold(z3, c_res_g_ref[r], c_res_beta_ref[r]).reshape(batch, cdim) + x

    # Final logit dot kept in f32 (tiny; keeps the output bit-close).
    logit = jnp.dot(x, c_w_fin_ref[...],
                    preferred_element_type=jnp.float32) + c_b_fin_ref[...]       # (B, 1)
    # TODO(synk): emit a lane-dense (1, B) slab instead of this (B, 1) column
    #             once B reaches production scale.
    out_ref[...] = jax.nn.sigmoid(logit)


@jax.jit
def event_predictor_forward(params, x_idx):
    """x_idx: (B, L) int32; column 0 = event id, columns 1..L-1 = conditions.

    Batch should be a multiple of 8 so the (NC*B, F) <-> (NC, B, F) reshapes
    inside the kernel are layout-trivial (sublane-tile boundary).
    """
    batch, length = x_idx.shape
    n_cond = length - 1
    bf16 = jnp.bfloat16

    # Glue: split indices; the kernel builds one-hots internally.
    ev_idx = x_idx[:, 0:1].astype(jnp.int32)                             # (B, 1)
    cond_idx = x_idx[:, 1:].astype(jnp.int32).T.reshape(n_cond * batch, 1)

    # Glue: fold the embedding tables into the first filter Linear (one less
    # dependent matmul in-kernel) and ship MXU weights in bf16.
    f_w_in_ev = params["f_w_in"][:EMB_DIM]                               # (E, F)
    f_w_in_cond = params["f_w_in"][EMB_DIM:]                             # (E, F)
    w_ev_fold = (params["ev_tab"] @ f_w_in_ev).astype(bf16)              # (V, F)
    w_cond_fold = (params["cond_tab"] @ f_w_in_cond).astype(bf16)        # (V, F)

    # Glue: zero-pad ev_tab to chain width (event_emb lands in lanes [0, E))
    # and give f_w_out / f_b_out EMB_DIM leading zero columns (filter output
    # lands in lanes [E, E+I)) -> no in-kernel lane concatenate.
    ev_tab_pad = jnp.pad(params["ev_tab"], ((0, 0), (0, INNER_DIM))).astype(bf16)  # (V, 35)
    f_w_out_pad = jnp.pad(params["f_w_out"], ((0, 0), (EMB_DIM, 0))).astype(bf16)  # (F, 35)
    f_b_out_pad = jnp.pad(params["f_b_out"], ((0, 0), (EMB_DIM, 0)))               # (1, 35)

    inputs = (
        ev_idx, cond_idx,
        w_ev_fold, w_cond_fold, params["f_b_in"],
        ev_tab_pad,
        params["f_res_w"].astype(bf16), params["f_res_b"],
        params["f_res_g"], params["f_res_beta"],
        f_w_out_pad, f_b_out_pad,
        params["c_res_w"].astype(bf16), params["c_res_b"],
        params["c_res_g"], params["c_res_beta"],
        params["c_w_fin"], params["c_b_fin"],
    )
    return pl.pallas_call(
        event_predictor_kernel,
        out_shape=jax.ShapeDtypeStruct((batch, 1), jnp.float32),
        in_specs=[pl.BlockSpec(memory_space=pltpu.MemorySpace.VMEM)
                  for _ in inputs],
        out_specs=pl.BlockSpec(memory_space=pltpu.MemorySpace.VMEM),
    )(*inputs)


def init_params(key):
    """Deterministic parameter init (shapes match the PyTorch module)."""
    k_evtab, k_condtab, k_fin, k_fres, k_fout, k_cres, k_cfin = jax.random.split(key, 7)

    def linear(k, fan_in, fan_out):
        bound = 1.0 / float(fan_in) ** 0.5
        kw, kb = jax.random.split(k)
        w = jax.random.uniform(kw, (fan_in, fan_out), jnp.float32, -bound, bound)
        b = jax.random.uniform(kb, (1, fan_out), jnp.float32, -bound, bound)
        return w, b

    def residual_stack(k, depth, dim):
        ws, bs = [], []
        for kk in jax.random.split(k, depth):
            w, b = linear(kk, dim, dim)
            ws.append(w)
            bs.append(b)
        return (jnp.stack(ws), jnp.stack(bs),
                jnp.ones((depth, 1, dim), jnp.float32),    # BN gamma
                jnp.zeros((depth, 1, dim), jnp.float32))   # BN beta

    f_w_in, f_b_in = linear(k_fin, 2 * EMB_DIM, FILTER_INNER_DIM)
    f_res_w, f_res_b, f_res_g, f_res_beta = residual_stack(
        k_fres, FILTER_DEPTH, FILTER_INNER_DIM)
    f_w_out, f_b_out = linear(k_fout, FILTER_INNER_DIM, INNER_DIM)
    c_res_w, c_res_b, c_res_g, c_res_beta = residual_stack(k_cres, DEPTH, CHAIN_DIM)
    c_w_fin, c_b_fin = linear(k_cfin, CHAIN_DIM, 1)

    return dict(
        ev_tab=jax.random.normal(k_evtab, (VOCAB, EMB_DIM), jnp.float32),
        cond_tab=jax.random.normal(k_condtab, (VOCAB, EMB_DIM), jnp.float32),
        f_w_in=f_w_in, f_b_in=f_b_in,
        f_res_w=f_res_w, f_res_b=f_res_b, f_res_g=f_res_g, f_res_beta=f_res_beta,
        f_w_out=f_w_out, f_b_out=f_b_out,
        c_res_w=c_res_w, c_res_b=c_res_b, c_res_g=c_res_g, c_res_beta=c_res_beta,
        c_w_fin=c_w_fin, c_b_fin=c_b_fin,
    )


def reference_forward(params, x_idx):
    """Pure-JAX f32 reference matching the PyTorch forward (train-mode BN)."""
    def residual(x, w, b, g, beta):
        h = x @ w + b
        h = jnp.maximum(h, 0.0)
        mean = h.mean(0, keepdims=True)
        var = jnp.square(h - mean).mean(0, keepdims=True)
        return (h - mean) * jax.lax.rsqrt(var + BN_EPS) * g + beta + x

    event_emb = params["ev_tab"][x_idx[:, 0]]
    base = jnp.zeros((x_idx.shape[0], INNER_DIM), jnp.float32)
    for c in range(1, x_idx.shape[1]):
        cond_emb = params["cond_tab"][x_idx[:, c]]
        emb = jnp.concatenate([event_emb, cond_emb], axis=1)
        h = emb @ params["f_w_in"] + params["f_b_in"]
        for r in range(FILTER_DEPTH):
            h = residual(h, params["f_res_w"][r], params["f_res_b"][r],
                         params["f_res_g"][r], params["f_res_beta"][r])
        base = base + (h @ params["f_w_out"] + params["f_b_out"])
    x = jnp.concatenate([event_emb, base], axis=1)
    for r in range(DEPTH):
        x = residual(x, params["c_res_w"][r], params["c_res_b"][r],
                     params["c_res_g"][r], params["c_res_beta"][r])
    return jax.nn.sigmoid(x @ params["c_w_fin"] + params["c_b_fin"])


if __name__ == "__main__":
    key = jax.random.PRNGKey(0)
    pkey, xkey = jax.random.split(key)
    params = init_params(pkey)

    # 8 examples, 1 event column + 3 condition columns
    B, L = 8, 4
    x_idx = jax.random.randint(xkey, (B, L), 0, VOCAB, dtype=jnp.int32)

    out = event_predictor_forward(params, x_idx)
    out = jax.block_until_ready(out)
    assert out.shape == (B, 1) and out.dtype == jnp.float32

    ref = reference_forward(params, x_idx)
    # Tolerance accounts for bf16 MXU operands in the kernel (f32 accumulate,
    # f32 BN statistics / residual adds / final logit dot).
    np.testing.assert_allclose(np.asarray(out), np.asarray(ref),
                               rtol=2e-2, atol=2e-2)
    print("KERNEL_OK")
</pallas_src>

<mosaic_0001>
module attributes {stable_mosaic.version = 11 : i64} {
  func.func @event_predictor_kernel(%arg0: memref<8x1xi32, #tpu.memory_space<vmem>>, %arg1: memref<24x1xi32, #tpu.memory_space<vmem>>, %arg2: memref<7x30xbf16, #tpu.memory_space<vmem>>, %arg3: memref<7x30xbf16, #tpu.memory_space<vmem>>, %arg4: memref<1x30xf32, #tpu.memory_space<vmem>>, %arg5: memref<7x35xbf16, #tpu.memory_space<vmem>>, %arg6: memref<5x30x30xbf16, #tpu.memory_space<vmem>>, %arg7: memref<5x1x30xf32, #tpu.memory_space<vmem>>, %arg8: memref<5x1x30xf32, #tpu.memory_space<vmem>>, %arg9: memref<5x1x30xf32, #tpu.memory_space<vmem>>, %arg10: memref<30x35xbf16, #tpu.memory_space<vmem>>, %arg11: memref<1x35xf32, #tpu.memory_space<vmem>>, %arg12: memref<5x35x35xbf16, #tpu.memory_space<vmem>>, %arg13: memref<5x1x35xf32, #tpu.memory_space<vmem>>, %arg14: memref<5x1x35xf32, #tpu.memory_space<vmem>>, %arg15: memref<5x1x35xf32, #tpu.memory_space<vmem>>, %arg16: memref<35x1xf32, #tpu.memory_space<vmem>>, %arg17: memref<1x1xf32, #tpu.memory_space<vmem>>, %arg18: memref<8x1xf32, #tpu.memory_space<vmem>>) attributes {dimension_semantics = [], scalar_prefetch = 0 : i64, scratch_operands = 0 : i64, tpu.core_type = #tpu.core_type<tc>} {
    %0 = tpu.iota {dimensions = array<i32: 1>} : vector<1x7xi32>
    %c0 = arith.constant 0 : index
    %c0_0 = arith.constant 0 : index
    %1 = vector.load %arg0[%c0, %c0_0] : memref<8x1xi32, #tpu.memory_space<vmem>>, vector<8x1xi32>
    %2 = vector.broadcast %1 : vector<8x1xi32> to vector<8x7xi32>
    %3 = vector.broadcast %0 : vector<1x7xi32> to vector<8x7xi32>
    %4 = arith.cmpi eq, %2, %3 : vector<8x7xi32>
    %5 = arith.extui %4 : vector<8x7xi1> to vector<8x7xi32>
    %6 = arith.sitofp %5 : vector<8x7xi32> to vector<8x7xf32>
    %7 = arith.truncf %6 : vector<8x7xf32> to vector<8x7xbf16>
    %c0_1 = arith.constant 0 : index
    %c0_2 = arith.constant 0 : index
    %8 = vector.load %arg1[%c0_1, %c0_2] : memref<24x1xi32, #tpu.memory_space<vmem>>, vector<24x1xi32>
    %9 = vector.broadcast %8 : vector<24x1xi32> to vector<24x7xi32>
    %10 = vector.broadcast %0 : vector<1x7xi32> to vector<24x7xi32>
    %11 = arith.cmpi eq, %9, %10 : vector<24x7xi32>
    %12 = arith.extui %11 : vector<24x7xi1> to vector<24x7xi32>
    %13 = arith.sitofp %12 : vector<24x7xi32> to vector<24x7xf32>
    %14 = arith.truncf %13 : vector<24x7xf32> to vector<24x7xbf16>
    %c0_3 = arith.constant 0 : index
    %c0_4 = arith.constant 0 : index
    %15 = vector.load %arg2[%c0_3, %c0_4] : memref<7x30xbf16, #tpu.memory_space<vmem>>, vector<7x30xbf16>
    %cst = arith.constant dense<0.000000e+00> : vector<8x30xf32>
    %16 = tpu.matmul %7, %15, %cst {dimension_numbers = #tpu.dot_dimension_numbers<[1], [0], [0], [1], [0, 0, 1, 1], [], []>} : vector<8x7xbf16>, vector<7x30xbf16>, vector<8x30xf32> -> vector<8x30xf32>
    %c0_5 = arith.constant 0 : index
    %c0_6 = arith.constant 0 : index
    %17 = vector.load %arg4[%c0_5, %c0_6] : memref<1x30xf32, #tpu.memory_space<vmem>>, vector<1x30xf32>
    %18 = vector.broadcast %17 : vector<1x30xf32> to vector<8x30xf32>
    %19 = arith.addf %16, %18 : vector<8x30xf32>
    %c0_7 = arith.constant 0 : index
    %c0_8 = arith.constant 0 : index
    %20 = vector.load %arg5[%c0_7, %c0_8] : memref<7x35xbf16, #tpu.memory_space<vmem>>, vector<7x35xbf16>
    %cst_9 = arith.constant dense<0.000000e+00> : vector<8x35xf32>
    %21 = tpu.matmul %7, %20, %cst_9 {dimension_numbers = #tpu.dot_dimension_numbers<[1], [0], [0], [1], [0, 0, 1, 1], [], []>} : vector<8x7xbf16>, vector<7x35xbf16>, vector<8x35xf32> -> vector<8x35xf32>
    %c0_10 = arith.constant 0 : index
    %c0_11 = arith.constant 0 : index
    %22 = vector.load %arg3[%c0_10, %c0_11] : memref<7x30xbf16, #tpu.memory_space<vmem>>, vector<7x30xbf16>
    %cst_12 = arith.constant dense<0.000000e+00> : vector<24x30xf32>
    %23 = tpu.matmul %14, %22, %cst_12 {dimension_numbers = #tpu.dot_dimension_numbers<[1], [0], [0], [1], [0, 0, 1, 1], [], []>} : vector<24x7xbf16>, vector<7x30xbf16>, vector<24x30xf32> -> vector<24x30xf32>
    %24 = vector.shape_cast %23 : vector<24x30xf32> to vector<3x8x30xf32>
    %25 = vector.shape_cast %19 : vector<8x30xf32> to vector<1x8x30xf32>
    %26 = vector.broadcast %25 : vector<1x8x30xf32> to vector<3x8x30xf32>
    %27 = arith.addf %24, %26 : vector<3x8x30xf32>
    %28 = vector.shape_cast %27 : vector<3x8x30xf32> to vector<24x30xf32>
    %29 = arith.truncf %28 : vector<24x30xf32> to vector<24x30xbf16>
    %c0_13 = arith.constant 0 : index
    %c0_14 = arith.constant 0 : index
    %c0_15 = arith.constant 0 : index
    %30 = vector.load %arg6[%c0_13, %c0_14, %c0_15] : memref<5x30x30xbf16, #tpu.memory_space<vmem>>, vector<1x30x30xbf16>
    %31 = vector.shape_cast %30 : vector<1x30x30xbf16> to vector<30x30xbf16>
    %cst_16 = arith.constant dense<0.000000e+00> : vector<24x30xf32>
    %32 = tpu.matmul %29, %31, %cst_16 {dimension_numbers = #tpu.dot_dimension_numbers<[1], [0], [0], [1], [0, 0, 1, 1], [], []>} : vector<24x30xbf16>, vector<30x30xbf16>, vector<24x30xf32> -> vector<24x30xf32>
    %c0_17 = arith.constant 0 : index
    %c0_18 = arith.constant 0 : index
    %c0_19 = arith.constant 0 : index
    %33 = vector.load %arg7[%c0_17, %c0_18, %c0_19] : memref<5x1x30xf32, #tpu.memory_space<vmem>>, vector<1x1x30xf32>
    %34 = vector.shape_cast %33 : vector<1x1x30xf32> to vector<1x30xf32>
    %35 = vector.broadcast %34 : vector<1x30xf32> to vector<24x30xf32>
    %36 = arith.addf %32, %35 : vector<24x30xf32>
    %cst_20 = arith.constant 0.000000e+00 : f32
    %37 = vector.broadcast %cst_20 : f32 to vector<24x30xf32>
    %38 = arith.maximumf %36, %37 : vector<24x30xf32>
    %39 = vector.shape_cast %38 : vector<24x30xf32> to vector<3x8x30xf32>
    %c0_21 = arith.constant 0 : index
    %c0_22 = arith.constant 0 : index
    %c0_23 = arith.constant 0 : index
    %40 = vector.load %arg8[%c0_21, %c0_22, %c0_23] : memref<5x1x30xf32, #tpu.memory_space<vmem>>, vector<1x1x30xf32>
    %41 = vector.shape_cast %40 : vector<1x1x30xf32> to vector<1x30xf32>
    %c0_24 = arith.constant 0 : index
    %c0_25 = arith.constant 0 : index
    %c0_26 = arith.constant 0 : index
    %42 = vector.load %arg9[%c0_24, %c0_25, %c0_26] : memref<5x1x30xf32, #tpu.memory_space<vmem>>, vector<1x1x30xf32>
    %43 = vector.shape_cast %42 : vector<1x1x30xf32> to vector<1x30xf32>
    %44 = arith.mulf %39, %39 : vector<3x8x30xf32>
    %45 = tpu.concatenate %39, %44 in 2 : vector<3x8x30xf32>, vector<3x8x30xf32> -> vector<3x8x60xf32>
    %cst_27 = arith.constant dense<0.000000e+00> : vector<3x60xf32>
    %46 = vector.multi_reduction <add>, %45, %cst_27 [1] : vector<3x8x60xf32> to vector<3x60xf32>
    %47 = vector.shape_cast %46 : vector<3x60xf32> to vector<3x1x60xf32>
    %cst_28 = arith.constant 1.250000e-01 : f32
    %48 = vector.broadcast %cst_28 : f32 to vector<3x1x60xf32>
    %49 = arith.mulf %47, %48 : vector<3x1x60xf32>
    %50 = vector.extract_strided_slice %49 {offsets = [0, 0, 0], sizes = [3, 1, 30], strides = [1, 1, 1]} : vector<3x1x60xf32> to vector<3x1x30xf32>
    %51 = vector.extract_strided_slice %49 {offsets = [0, 0, 30], sizes = [3, 1, 30], strides = [1, 1, 1]} : vector<3x1x60xf32> to vector<3x1x30xf32>
    %52 = arith.mulf %50, %50 : vector<3x1x30xf32>
    %53 = arith.subf %51, %52 : vector<3x1x30xf32>
    %cst_29 = arith.constant 9.99999974E-6 : f32
    %54 = vector.broadcast %cst_29 : f32 to vector<3x1x30xf32>
    %55 = arith.addf %53, %54 : vector<3x1x30xf32>
    %56 = math.rsqrt %55 : vector<3x1x30xf32>
    %57 = vector.shape_cast %41 : vector<1x30xf32> to vector<1x1x30xf32>
    %58 = vector.broadcast %57 : vector<1x1x30xf32> to vector<3x1x30xf32>
    %59 = arith.mulf %56, %58 : vector<3x1x30xf32>
    %60 = arith.mulf %50, %59 : vector<3x1x30xf32>
    %61 = vector.shape_cast %43 : vector<1x30xf32> to vector<1x1x30xf32>
    %62 = vector.broadcast %61 : vector<1x1x30xf32> to vector<3x1x30xf32>
    %63 = arith.subf %62, %60 : vector<3x1x30xf32>
    %64 = vector.broadcast %59 : vector<3x1x30xf32> to vector<3x8x30xf32>
    %65 = arith.mulf %39, %64 : vector<3x8x30xf32>
    %66 = vector.broadcast %63 : vector<3x1x30xf32> to vector<3x8x30xf32>
    %67 = arith.addf %65, %66 : vector<3x8x30xf32>
    %68 = vector.shape_cast %67 : vector<3x8x30xf32> to vector<24x30xf32>
    %69 = arith.addf %68, %28 : vector<24x30xf32>
    %70 = arith.truncf %69 : vector<24x30xf32> to vector<24x30xbf16>
    %c1 = arith.constant 1 : index
    %c0_30 = arith.constant 0 : index
    %c0_31 = arith.constant 0 : index
    %71 = vector.load %arg6[%c1, %c0_30, %c0_31] : memref<5x30x30xbf16, #tpu.memory_space<vmem>>, vector<1x30x30xbf16>
    %72 = vector.shape_cast %71 : vector<1x30x30xbf16> to vector<30x30xbf16>
    %cst_32 = arith.constant dense<0.000000e+00> : vector<24x30xf32>
    %73 = tpu.matmul %70, %72, %cst_32 {dimension_numbers = #tpu.dot_dimension_numbers<[1], [0], [0], [1], [0, 0, 1, 1], [], []>} : vector<24x30xbf16>, vector<30x30xbf16>, vector<24x30xf32> -> vector<24x30xf32>
    %c1_33 = arith.constant 1 : index
    %c0_34 = arith.constant 0 : index
    %c0_35 = arith.constant 0 : index
    %74 = vector.load %arg7[%c1_33, %c0_34, %c0_35] : memref<5x1x30xf32, #tpu.memory_space<vmem>>, vector<1x1x30xf32>
    %75 = vector.shape_cast %74 : vector<1x1x30xf32> to vector<1x30xf32>
    %76 = vector.broadcast %75 : vector<1x30xf32> to vector<24x30xf32>
    %77 = arith.addf %73, %76 : vector<24x30xf32>
    %cst_36 = arith.constant 0.000000e+00 : f32
    %78 = vector.broadcast %cst_36 : f32 to vector<24x30xf32>
    %79 = arith.maximumf %77, %78 : vector<24x30xf32>
    %80 = vector.shape_cast %79 : vector<24x30xf32> to vector<3x8x30xf32>
    %c1_37 = arith.constant 1 : index
    %c0_38 = arith.constant 0 : index
    %c0_39 = arith.constant 0 : index
    %81 = vector.load %arg8[%c1_37, %c0_38, %c0_39] : memref<5x1x30xf32, #tpu.memory_space<vmem>>, vector<1x1x30xf32>
    %82 = vector.shape_cast %81 : vector<1x1x30xf32> to vector<1x30xf32>
    %c1_40 = arith.constant 1 : index
    %c0_41 = arith.constant 0 : index
    %c0_42 = arith.constant 0 : index
    %83 = vector.load %arg9[%c1_40, %c0_41, %c0_42] : memref<5x1x30xf32, #tpu.memory_space<vmem>>, vector<1x1x30xf32>
    %84 = vector.shape_cast %83 : vector<1x1x30xf32> to vector<1x30xf32>
    %85 = arith.mulf %80, %80 : vector<3x8x30xf32>
    %86 = tpu.concatenate %80, %85 in 2 : vector<3x8x30xf32>, vector<3x8x30xf32> -> vector<3x8x60xf32>
    %cst_43 = arith.constant dense<0.000000e+00> : vector<3x60xf32>
    %87 = vector.multi_reduction <add>, %86, %cst_43 [1] : vector<3x8x60xf32> to vector<3x60xf32>
    %88 = vector.shape_cast %87 : vector<3x60xf32> to vector<3x1x60xf32>
    %cst_44 = arith.constant 1.250000e-01 : f32
    %89 = vector.broadcast %cst_44 : f32 to vector<3x1x60xf32>
    %90 = arith.mulf %88, %89 : vector<3x1x60xf32>
    %91 = vector.extract_strided_slice %90 {offsets = [0, 0, 0], sizes = [3, 1, 30], strides = [1, 1, 1]} : vector<3x1x60xf32> to vector<3x1x30xf32>
    %92 = vector.extract_strided_slice %90 {offsets = [0, 0, 30], sizes = [3, 1, 30], strides = [1, 1, 1]} : vector<3x1x60xf32> to vector<3x1x30xf32>
    %93 = arith.mulf %91, %91 : vector<3x1x30xf32>
    %94 = arith.subf %92, %93 : vector<3x1x30xf32>
    %cst_45 = arith.constant 9.99999974E-6 : f32
    %95 = vector.broadcast %cst_45 : f32 to vector<3x1x30xf32>
    %96 = arith.addf %94, %95 : vector<3x1x30xf32>
    %97 = math.rsqrt %96 : vector<3x1x30xf32>
    %98 = vector.shape_cast %82 : vector<1x30xf32> to vector<1x1x30xf32>
    %99 = vector.broadcast %98 : vector<1x1x30xf32> to vector<3x1x30xf32>
    %100 = arith.mulf %97, %99 : vector<3x1x30xf32>
    %101 = arith.mulf %91, %100 : vector<3x1x30xf32>
    %102 = vector.shape_cast %84 : vector<1x30xf32> to vector<1x1x30xf32>
    %103 = vector.broadcast %102 : vector<1x1x30xf32> to vector<3x1x30xf32>
    %104 = arith.subf %103, %101 : vector<3x1x30xf32>
    %105 = vector.broadcast %100 : vector<3x1x30xf32> to vector<3x8x30xf32>
    %106 = arith.mulf %80, %105 : vector<3x8x30xf32>
    %107 = vector.broadcast %104 : vector<3x1x30xf32> to vector<3x8x30xf32>
    %108 = arith.addf %106, %107 : vector<3x8x30xf32>
    %109 = vector.shape_cast %108 : vector<3x8x30xf32> to vector<24x30xf32>
    %110 = arith.addf %109, %69 : vector<24x30xf32>
    %111 = arith.truncf %110 : vector<24x30xf32> to vector<24x30xbf16>
    %c2 = arith.constant 2 : index
    %c0_46 = arith.constant 0 : index
    %c0_47 = arith.constant 0 : index
    %112 = vector.load %arg6[%c2, %c0_46, %c0_47] : memref<5x30x30xbf16, #tpu.memory_space<vmem>>, vector<1x30x30xbf16>
    %113 = vector.shape_cast %112 : vector<1x30x30xbf16> to vector<30x30xbf16>
    %cst_48 = arith.constant dense<0.000000e+00> : vector<24x30xf32>
    %114 = tpu.matmul %111, %113, %cst_48 {dimension_numbers = #tpu.dot_dimension_numbers<[1], [0], [0], [1], [0, 0, 1, 1], [], []>} : vector<24x30xbf16>, vector<30x30xbf16>, vector<24x30xf32> -> vector<24x30xf32>
    %c2_49 = arith.constant 2 : index
    %c0_50 = arith.constant 0 : index
    %c0_51 = arith.constant 0 : index
    %115 = vector.load %arg7[%c2_49, %c0_50, %c0_51] : memref<5x1x30xf32, #tpu.memory_space<vmem>>, vector<1x1x30xf32>
    %116 = vector.shape_cast %115 : vector<1x1x30xf32> to vector<1x30xf32>
    %117 = vector.broadcast %116 : vector<1x30xf32> to vector<24x30xf32>
    %118 = arith.addf %114, %117 : vector<24x30xf32>
    %cst_52 = arith.constant 0.000000e+00 : f32
    %119 = vector.broadcast %cst_52 : f32 to vector<24x30xf32>
    %120 = arith.maximumf %118, %119 : vector<24x30xf32>
    %121 = vector.shape_cast %120 : vector<24x30xf32> to vector<3x8x30xf32>
    %c2_53 = arith.constant 2 : index
    %c0_54 = arith.constant 0 : index
    %c0_55 = arith.constant 0 : index
    %122 = vector.load %arg8[%c2_53, %c0_54, %c0_55] : memref<5x1x30xf32, #tpu.memory_space<vmem>>, vector<1x1x30xf32>
    %123 = vector.shape_cast %122 : vector<1x1x30xf32> to vector<1x30xf32>
    %c2_56 = arith.constant 2 : index
    %c0_57 = arith.constant 0 : index
    %c0_58 = arith.constant 0 : index
    %124 = vector.load %arg9[%c2_56, %c0_57, %c0_58] : memref<5x1x30xf32, #tpu.memory_space<vmem>>, vector<1x1x30xf32>
    %125 = vector.shape_cast %124 : vector<1x1x30xf32> to vector<1x30xf32>
    %126 = arith.mulf %121, %121 : vector<3x8x30xf32>
    %127 = tpu.concatenate %121, %126 in 2 : vector<3x8x30xf32>, vector<3x8x30xf32> -> vector<3x8x60xf32>
    %cst_59 = arith.constant dense<0.000000e+00> : vector<3x60xf32>
    %128 = vector.multi_reduction <add>, %127, %cst_59 [1] : vector<3x8x60xf32> to vector<3x60xf32>
    %129 = vector.shape_cast %128 : vector<3x60xf32> to vector<3x1x60xf32>
    %cst_60 = arith.constant 1.250000e-01 : f32
    %130 = vector.broadcast %cst_60 : f32 to vector<3x1x60xf32>
    %131 = arith.mulf %129, %130 : vector<3x1x60xf32>
    %132 = vector.extract_strided_slice %131 {offsets = [0, 0, 0], sizes = [3, 1, 30], strides = [1, 1, 1]} : vector<3x1x60xf32> to vector<3x1x30xf32>
    %133 = vector.extract_strided_slice %131 {offsets = [0, 0, 30], sizes = [3, 1, 30], strides = [1, 1, 1]} : vector<3x1x60xf32> to vector<3x1x30xf32>
    %134 = arith.mulf %132, %132 : vector<3x1x30xf32>
    %135 = arith.subf %133, %134 : vector<3x1x30xf32>
    %cst_61 = arith.constant 9.99999974E-6 : f32
    %136 = vector.broadcast %cst_61 : f32 to vector<3x1x30xf32>
    %137 = arith.addf %135, %136 : vector<3x1x30xf32>
    %138 = math.rsqrt %137 : vector<3x1x30xf32>
    %139 = vector.shape_cast %123 : vector<1x30xf32> to vector<1x1x30xf32>
    %140 = vector.broadcast %139 : vector<1x1x30xf32> to vector<3x1x30xf32>
    %141 = arith.mulf %138, %140 : vector<3x1x30xf32>
    %142 = arith.mulf %132, %141 : vector<3x1x30xf32>
    %143 = vector.shape_cast %125 : vector<1x30xf32> to vector<1x1x30xf32>
    %144 = vector.broadcast %143 : vector<1x1x30xf32> to vector<3x1x30xf32>
    %145 = arith.subf %144, %142 : vector<3x1x30xf32>
    %146 = vector.broadcast %141 : vector<3x1x30xf32> to vector<3x8x30xf32>
    %147 = arith.mulf %121, %146 : vector<3x8x30xf32>
    %148 = vector.broadcast %145 : vector<3x1x30xf32> to vector<3x8x30xf32>
    %149 = arith.addf %147, %148 : vector<3x8x30xf32>
    %150 = vector.shape_cast %149 : vector<3x8x30xf32> to vector<24x30xf32>
    %151 = arith.addf %150, %110 : vector<24x30xf32>
    %152 = arith.truncf %151 : vector<24x30xf32> to vector<24x30xbf16>
    %c3 = arith.constant 3 : index
    %c0_62 = arith.constant 0 : index
    %c0_63 = arith.constant 0 : index
    %153 = vector.load %arg6[%c3, %c0_62, %c0_63] : memref<5x30x30xbf16, #tpu.memory_space<vmem>>, vector<1x30x30xbf16>
    %154 = vector.shape_cast %153 : vector<1x30x30xbf16> to vector<30x30xbf16>
    %cst_64 = arith.constant dense<0.000000e+00> : vector<24x30xf32>
    %155 = tpu.matmul %152, %154, %cst_64 {dimension_numbers = #tpu.dot_dimension_numbers<[1], [0], [0], [1], [0, 0, 1, 1], [], []>} : vector<24x30xbf16>, vector<30x30xbf16>, vector<24x30xf32> -> vector<24x30xf32>
    %c3_65 = arith.constant 3 : index
    %c0_66 = arith.constant 0 : index
    %c0_67 = arith.constant 0 : index
    %156 = vector.load %arg7[%c3_65, %c0_66, %c0_67] : memref<5x1x30xf32, #tpu.memory_space<vmem>>, vector<1x1x30xf32>
    %157 = vector.shape_cast %156 : vector<1x1x30xf32> to vector<1x30xf32>
    %158 = vector.broadcast %157 : vector<1x30xf32> to vector<24x30xf32>
    %159 = arith.addf %155, %158 : vector<24x30xf32>
    %cst_68 = arith.constant 0.000000e+00 : f32
    %160 = vector.broadcast %cst_68 : f32 to vector<24x30xf32>
    %161 = arith.maximumf %159, %160 : vector<24x30xf32>
    %162 = vector.shape_cast %161 : vector<24x30xf32> to vector<3x8x30xf32>
    %c3_69 = arith.constant 3 : index
    %c0_70 = arith.constant 0 : index
    %c0_71 = arith.constant 0 : index
    %163 = vector.load %arg8[%c3_69, %c0_70, %c0_71] : memref<5x1x30xf32, #tpu.memory_space<vmem>>, vector<1x1x30xf32>
    %164 = vector.shape_cast %163 : vector<1x1x30xf32> to vector<1x30xf32>
    %c3_72 = arith.constant 3 : index
    %c0_73 = arith.constant 0 : index
    %c0_74 = arith.constant 0 : index
    %165 = vector.load %arg9[%c3_72, %c0_73, %c0_74] : memref<5x1x30xf32, #tpu.memory_space<vmem>>, vector<1x1x30xf32>
    %166 = vector.shape_cast %165 : vector<1x1x30xf32> to vector<1x30xf32>
    %167 = arith.mulf %162, %162 : vector<3x8x30xf32>
    %168 = tpu.concatenate %162, %167 in 2 : vector<3x8x30xf32>, vector<3x8x30xf32> -> vector<3x8x60xf32>
    %cst_75 = arith.constant dense<0.000000e+00> : vector<3x60xf32>
    %169 = vector.multi_reduction <add>, %168, %cst_75 [1] : vector<3x8x60xf32> to vector<3x60xf32>
    %170 = vector.shape_cast %169 : vector<3x60xf32> to vector<3x1x60xf32>
    %cst_76 = arith.constant 1.250000e-01 : f32
    %171 = vector.broadcast %cst_76 : f32 to vector<3x1x60xf32>
    %172 = arith.mulf %170, %171 : vector<3x1x60xf32>
    %173 = vector.extract_strided_slice %172 {offsets = [0, 0, 0], sizes = [3, 1, 30], strides = [1, 1, 1]} : vector<3x1x60xf32> to vector<3x1x30xf32>
    %174 = vector.extract_strided_slice %172 {offsets = [0, 0, 30], sizes = [3, 1, 30], strides = [1, 1, 1]} : vector<3x1x60xf32> to vector<3x1x30xf32>
    %175 = arith.mulf %173, %173 : vector<3x1x30xf32>
    %176 = arith.subf %174, %175 : vector<3x1x30xf32>
    %cst_77 = arith.constant 9.99999974E-6 : f32
    %177 = vector.broadcast %cst_77 : f32 to vector<3x1x30xf32>
    %178 = arith.addf %176, %177 : vector<3x1x30xf32>
    %179 = math.rsqrt %178 : vector<3x1x30xf32>
    %180 = vector.shape_cast %164 : vector<1x30xf32> to vector<1x1x30xf32>
    %181 = vector.broadcast %180 : vector<1x1x30xf32> to vector<3x1x30xf32>
    %182 = arith.mulf %179, %181 : vector<3x1x30xf32>
    %183 = arith.mulf %173, %182 : vector<3x1x30xf32>
    %184 = vector.shape_cast %166 : vector<1x30xf32> to vector<1x1x30xf32>
    %185 = vector.broadcast %184 : vector<1x1x30xf32> to vector<3x1x30xf32>
    %186 = arith.subf %185, %183 : vector<3x1x30xf32>
    %187 = vector.broadcast %182 : vector<3x1x30xf32> to vector<3x8x30xf32>
    %188 = arith.mulf %162, %187 : vector<3x8x30xf32>
    %189 = vector.broadcast %186 : vector<3x1x30xf32> to vector<3x8x30xf32>
    %190 = arith.addf %188, %189 : vector<3x8x30xf32>
    %191 = vector.shape_cast %190 : vector<3x8x30xf32> to vector<24x30xf32>
    %192 = arith.addf %191, %151 : vector<24x30xf32>
    %193 = arith.truncf %192 : vector<24x30xf32> to vector<24x30xbf16>
    %c4 = arith.constant 4 : index
    %c0_78 = arith.constant 0 : index
    %c0_79 = arith.constant 0 : index
    %194 = vector.load %arg6[%c4, %c0_78, %c0_79] : memref<5x30x30xbf16, #tpu.memory_space<vmem>>, vector<1x30x30xbf16>
    %195 = vector.shape_cast %194 : vector<1x30x30xbf16> to vector<30x30xbf16>
    %cst_80 = arith.constant dense<0.000000e+00> : vector<24x30xf32>
    %196 = tpu.matmul %193, %195, %cst_80 {dimension_numbers = #tpu.dot_dimension_numbers<[1], [0], [0], [1], [0, 0, 1, 1], [], []>} : vector<24x30xbf16>, vector<30x30xbf16>, vector<24x30xf32> -> vector<24x30xf32>
    %c4_81 = arith.constant 4 : index
    %c0_82 = arith.constant 0 : index
    %c0_83 = arith.constant 0 : index
    %197 = vector.load %arg7[%c4_81, %c0_82, %c0_83] : memref<5x1x30xf32, #tpu.memory_space<vmem>>, vector<1x1x30xf32>
    %198 = vector.shape_cast %197 : vector<1x1x30xf32> to vector<1x30xf32>
    %199 = vector.broadcast %198 : vector<1x30xf32> to vector<24x30xf32>
    %200 = arith.addf %196, %199 : vector<24x30xf32>
    %cst_84 = arith.constant 0.000000e+00 : f32
    %201 = vector.broadcast %cst_84 : f32 to vector<24x30xf32>
    %202 = arith.maximumf %200, %201 : vector<24x30xf32>
    %203 = vector.shape_cast %202 : vector<24x30xf32> to vector<3x8x30xf32>
    %c4_85 = arith.constant 4 : index
    %c0_86 = arith.constant 0 : index
    %c0_87 = arith.constant 0 : index
    %204 = vector.load %arg8[%c4_85, %c0_86, %c0_87] : memref<5x1x30xf32, #tpu.memory_space<vmem>>, vector<1x1x30xf32>
    %205 = vector.shape_cast %204 : vector<1x1x30xf32> to vector<1x30xf32>
    %c4_88 = arith.constant 4 : index
    %c0_89 = arith.constant 0 : index
    %c0_90 = arith.constant 0 : index
    %206 = vector.load %arg9[%c4_88, %c0_89, %c0_90] : memref<5x1x30xf32, #tpu.memory_space<vmem>>, vector<1x1x30xf32>
    %207 = vector.shape_cast %206 : vector<1x1x30xf32> to vector<1x30xf32>
    %208 = arith.mulf %203, %203 : vector<3x8x30xf32>
    %209 = tpu.concatenate %203, %208 in 2 : vector<3x8x30xf32>, vector<3x8x30xf32> -> vector<3x8x60xf32>
    %cst_91 = arith.constant dense<0.000000e+00> : vector<3x60xf32>
    %210 = vector.multi_reduction <add>, %209, %cst_91 [1] : vector<3x8x60xf32> to vector<3x60xf32>
    %211 = vector.shape_cast %210 : vector<3x60xf32> to vector<3x1x60xf32>
    %cst_92 = arith.constant 1.250000e-01 : f32
    %212 = vector.broadcast %cst_92 : f32 to vector<3x1x60xf32>
    %213 = arith.mulf %211, %212 : vector<3x1x60xf32>
    %214 = vector.extract_strided_slice %213 {offsets = [0, 0, 0], sizes = [3, 1, 30], strides = [1, 1, 1]} : vector<3x1x60xf32> to vector<3x1x30xf32>
    %215 = vector.extract_strided_slice %213 {offsets = [0, 0, 30], sizes = [3, 1, 30], strides = [1, 1, 1]} : vector<3x1x60xf32> to vector<3x1x30xf32>
    %216 = arith.mulf %214, %214 : vector<3x1x30xf32>
    %217 = arith.subf %215, %216 : vector<3x1x30xf32>
    %cst_93 = arith.constant 9.99999974E-6 : f32
    %218 = vector.broadcast %cst_93 : f32 to vector<3x1x30xf32>
    %219 = arith.addf %217, %218 : vector<3x1x30xf32>
    %220 = math.rsqrt %219 : vector<3x1x30xf32>
    %221 = vector.shape_cast %205 : vector<1x30xf32> to vector<1x1x30xf32>
    %222 = vector.broadcast %221 : vector<1x1x30xf32> to vector<3x1x30xf32>
    %223 = arith.mulf %220, %222 : vector<3x1x30xf32>
    %224 = arith.mulf %214, %223 : vector<3x1x30xf32>
    %225 = vector.shape_cast %207 : vector<1x30xf32> to vector<1x1x30xf32>
    %226 = vector.broadcast %225 : vector<1x1x30xf32> to vector<3x1x30xf32>
    %227 = arith.subf %226, %224 : vector<3x1x30xf32>
    %228 = vector.broadcast %223 : vector<3x1x30xf32> to vector<3x8x30xf32>
    %229 = arith.mulf %203, %228 : vector<3x8x30xf32>
    %230 = vector.broadcast %227 : vector<3x1x30xf32> to vector<3x8x30xf32>
    %231 = arith.addf %229, %230 : vector<3x8x30xf32>
    %232 = vector.shape_cast %231 : vector<3x8x30xf32> to vector<24x30xf32>
    %233 = arith.addf %232, %192 : vector<24x30xf32>
    %234 = arith.truncf %233 : vector<24x30xf32> to vector<24x30xbf16>
    %c0_94 = arith.constant 0 : index
    %c0_95 = arith.constant 0 : index
    %235 = vector.load %arg10[%c0_94, %c0_95] : memref<30x35xbf16, #tpu.memory_space<vmem>>, vector<30x35xbf16>
    %cst_96 = arith.constant dense<0.000000e+00> : vector<24x35xf32>
    %236 = tpu.matmul %234, %235, %cst_96 {dimension_numbers = #tpu.dot_dimension_numbers<[1], [0], [0], [1], [0, 0, 1, 1], [], []>} : vector<24x30xbf16>, vector<30x35xbf16>, vector<24x35xf32> -> vector<24x35xf32>
    %c0_97 = arith.constant 0 : index
    %c0_98 = arith.constant 0 : index
    %237 = vector.load %arg11[%c0_97, %c0_98] : memref<1x35xf32, #tpu.memory_space<vmem>>, vector<1x35xf32>
    %238 = vector.broadcast %237 : vector<1x35xf32> to vector<24x35xf32>
    %239 = arith.addf %236, %238 : vector<24x35xf32>
    %240 = vector.shape_cast %239 : vector<24x35xf32> to vector<3x8x35xf32>
    %cst_99 = arith.constant dense<0.000000e+00> : vector<8x35xf32>
    %241 = vector.multi_reduction <add>, %240, %cst_99 [0] : vector<3x8x35xf32> to vector<8x35xf32>
    %242 = arith.addf %21, %241 : vector<8x35xf32>
    %243 = arith.truncf %242 : vector<8x35xf32> to vector<8x35xbf16>
    %c0_100 = arith.constant 0 : index
    %c0_101 = arith.constant 0 : index
    %c0_102 = arith.constant 0 : index
    %244 = vector.load %arg12[%c0_100, %c0_101, %c0_102] : memref<5x35x35xbf16, #tpu.memory_space<vmem>>, vector<1x35x35xbf16>
    %245 = vector.shape_cast %244 : vector<1x35x35xbf16> to vector<35x35xbf16>
    %cst_103 = arith.constant dense<0.000000e+00> : vector<8x35xf32>
    %246 = tpu.matmul %243, %245, %cst_103 {dimension_numbers = #tpu.dot_dimension_numbers<[1], [0], [0], [1], [0, 0, 1, 1], [], []>} : vector<8x35xbf16>, vector<35x35xbf16>, vector<8x35xf32> -> vector<8x35xf32>
    %c0_104 = arith.constant 0 : index
    %c0_105 = arith.constant 0 : index
    %c0_106 = arith.constant 0 : index
    %247 = vector.load %arg13[%c0_104, %c0_105, %c0_106] : memref<5x1x35xf32, #tpu.memory_space<vmem>>, vector<1x1x35xf32>
    %248 = vector.shape_cast %247 : vector<1x1x35xf32> to vector<1x35xf32>
    %249 = vector.broadcast %248 : vector<1x35xf32> to vector<8x35xf32>
    %250 = arith.addf %246, %249 : vector<8x35xf32>
    %cst_107 = arith.constant 0.000000e+00 : f32
    %251 = vector.broadcast %cst_107 : f32 to vector<8x35xf32>
    %252 = arith.maximumf %250, %251 : vector<8x35xf32>
    %253 = vector.shape_cast %252 : vector<8x35xf32> to vector<1x8x35xf32>
    %c0_108 = arith.constant 0 : index
    %c0_109 = arith.constant 0 : index
    %c0_110 = arith.constant 0 : index
    %254 = vector.load %arg14[%c0_108, %c0_109, %c0_110] : memref<5x1x35xf32, #tpu.memory_space<vmem>>, vector<1x1x35xf32>
    %255 = vector.shape_cast %254 : vector<1x1x35xf32> to vector<1x35xf32>
    %c0_111 = arith.constant 0 : index
    %c0_112 = arith.constant 0 : index
    %c0_113 = arith.constant 0 : index
    %256 = vector.load %arg15[%c0_111, %c0_112, %c0_113] : memref<5x1x35xf32, #tpu.memory_space<vmem>>, vector<1x1x35xf32>
    %257 = vector.shape_cast %256 : vector<1x1x35xf32> to vector<1x35xf32>
    %258 = arith.mulf %253, %253 : vector<1x8x35xf32>
    %259 = tpu.concatenate %253, %258 in 2 : vector<1x8x35xf32>, vector<1x8x35xf32> -> vector<1x8x70xf32>
    %cst_114 = arith.constant dense<0.000000e+00> : vector<1x70xf32>
    %260 = vector.multi_reduction <add>, %259, %cst_114 [1] : vector<1x8x70xf32> to vector<1x70xf32>
    %261 = vector.shape_cast %260 : vector<1x70xf32> to vector<1x1x70xf32>
    %cst_115 = arith.constant 1.250000e-01 : f32
    %262 = vector.broadcast %cst_115 : f32 to vector<1x1x70xf32>
    %263 = arith.mulf %261, %262 : vector<1x1x70xf32>
    %264 = vector.extract_strided_slice %263 {offsets = [0, 0, 0], sizes = [1, 1, 35], strides = [1, 1, 1]} : vector<1x1x70xf32> to vector<1x1x35xf32>
    %265 = vector.extract_strided_slice %263 {offsets = [0, 0, 35], sizes = [1, 1, 35], strides = [1, 1, 1]} : vector<1x1x70xf32> to vector<1x1x35xf32>
    %266 = arith.mulf %264, %264 : vector<1x1x35xf32>
    %267 = arith.subf %265, %266 : vector<1x1x35xf32>
    %cst_116 = arith.constant 9.99999974E-6 : f32
    %268 = vector.broadcast %cst_116 : f32 to vector<1x1x35xf32>
    %269 = arith.addf %267, %268 : vector<1x1x35xf32>
    %270 = math.rsqrt %269 : vector<1x1x35xf32>
    %271 = vector.shape_cast %255 : vector<1x35xf32> to vector<1x1x35xf32>
    %272 = arith.mulf %270, %271 : vector<1x1x35xf32>
    %273 = arith.mulf %264, %272 : vector<1x1x35xf32>
    %274 = vector.shape_cast %257 : vector<1x35xf32> to vector<1x1x35xf32>
    %275 = arith.subf %274, %273 : vector<1x1x35xf32>
    %276 = vector.broadcast %272 : vector<1x1x35xf32> to vector<1x8x35xf32>
    %277 = arith.mulf %253, %276 : vector<1x8x35xf32>
    %278 = vector.broadcast %275 : vector<1x1x35xf32> to vector<1x8x35xf32>
    %279 = arith.addf %277, %278 : vector<1x8x35xf32>
    %280 = vector.shape_cast %279 : vector<1x8x35xf32> to vector<8x35xf32>
    %281 = arith.addf %280, %242 : vector<8x35xf32>
    %282 = arith.truncf %281 : vector<8x35xf32> to vector<8x35xbf16>
    %c1_117 = arith.constant 1 : index
    %c0_118 = arith.constant 0 : index
    %c0_119 = arith.constant 0 : index
    %283 = vector.load %arg12[%c1_117, %c0_118, %c0_119] : memref<5x35x35xbf16, #tpu.memory_space<vmem>>, vector<1x35x35xbf16>
    %284 = vector.shape_cast %283 : vector<1x35x35xbf16> to vector<35x35xbf16>
    %cst_120 = arith.constant dense<0.000000e+00> : vector<8x35xf32>
    %285 = tpu.matmul %282, %284, %cst_120 {dimension_numbers = #tpu.dot_dimension_numbers<[1], [0], [0], [1], [0, 0, 1, 1], [], []>} : vector<8x35xbf16>, vector<35x35xbf16>, vector<8x35xf32> -> vector<8x35xf32>
    %c1_121 = arith.constant 1 : index
    %c0_122 = arith.constant 0 : index
    %c0_123 = arith.constant 0 : index
    %286 = vector.load %arg13[%c1_121, %c0_122, %c0_123] : memref<5x1x35xf32, #tpu.memory_space<vmem>>, vector<1x1x35xf32>
    %287 = vector.shape_cast %286 : vector<1x1x35xf32> to vector<1x35xf32>
    %288 = vector.broadcast %287 : vector<1x35xf32> to vector<8x35xf32>
    %289 = arith.addf %285, %288 : vector<8x35xf32>
    %cst_124 = arith.constant 0.000000e+00 : f32
    %290 = vector.broadcast %cst_124 : f32 to vector<8x35xf32>
    %291 = arith.maximumf %289, %290 : vector<8x35xf32>
    %292 = vector.shape_cast %291 : vector<8x35xf32> to vector<1x8x35xf32>
    %c1_125 = arith.constant 1 : index
    %c0_126 = arith.constant 0 : index
    %c0_127 = arith.constant 0 : index
    %293 = vector.load %arg14[%c1_125, %c0_126, %c0_127] : memref<5x1x35xf32, #tpu.memory_space<vmem>>, vector<1x1x35xf32>
    %294 = vector.shape_cast %293 : vector<1x1x35xf32> to vector<1x35xf32>
    %c1_128 = arith.constant 1 : index
    %c0_129 = arith.constant 0 : index
    %c0_130 = arith.constant 0 : index
    %295 = vector.load %arg15[%c1_128, %c0_129, %c0_130] : memref<5x1x35xf32, #tpu.memory_space<vmem>>, vector<1x1x35xf32>
    %296 = vector.shape_cast %295 : vector<1x1x35xf32> to vector<1x35xf32>
    %297 = arith.mulf %292, %292 : vector<1x8x35xf32>
    %298 = tpu.concatenate %292, %297 in 2 : vector<1x8x35xf32>, vector<1x8x35xf32> -> vector<1x8x70xf32>
    %cst_131 = arith.constant dense<0.000000e+00> : vector<1x70xf32>
    %299 = vector.multi_reduction <add>, %298, %cst_131 [1] : vector<1x8x70xf32> to vector<1x70xf32>
    %300 = vector.shape_cast %299 : vector<1x70xf32> to vector<1x1x70xf32>
    %cst_132 = arith.constant 1.250000e-01 : f32
    %301 = vector.broadcast %cst_132 : f32 to vector<1x1x70xf32>
    %302 = arith.mulf %300, %301 : vector<1x1x70xf32>
    %303 = vector.extract_strided_slice %302 {offsets = [0, 0, 0], sizes = [1, 1, 35], strides = [1, 1, 1]} : vector<1x1x70xf32> to vector<1x1x35xf32>
    %304 = vector.extract_strided_slice %302 {offsets = [0, 0, 35], sizes = [1, 1, 35], strides = [1, 1, 1]} : vector<1x1x70xf32> to vector<1x1x35xf32>
    %305 = arith.mulf %303, %303 : vector<1x1x35xf32>
    %306 = arith.subf %304, %305 : vector<1x1x35xf32>
    %cst_133 = arith.constant 9.99999974E-6 : f32
    %307 = vector.broadcast %cst_133 : f32 to vector<1x1x35xf32>
    %308 = arith.addf %306, %307 : vector<1x1x35xf32>
    %309 = math.rsqrt %308 : vector<1x1x35xf32>
    %310 = vector.shape_cast %294 : vector<1x35xf32> to vector<1x1x35xf32>
    %311 = arith.mulf %309, %310 : vector<1x1x35xf32>
    %312 = arith.mulf %303, %311 : vector<1x1x35xf32>
    %313 = vector.shape_cast %296 : vector<1x35xf32> to vector<1x1x35xf32>
    %314 = arith.subf %313, %312 : vector<1x1x35xf32>
    %315 = vector.broadcast %311 : vector<1x1x35xf32> to vector<1x8x35xf32>
    %316 = arith.mulf %292, %315 : vector<1x8x35xf32>
    %317 = vector.broadcast %314 : vector<1x1x35xf32> to vector<1x8x35xf32>
    %318 = arith.addf %316, %317 : vector<1x8x35xf32>
    %319 = vector.shape_cast %318 : vector<1x8x35xf32> to vector<8x35xf32>
    %320 = arith.addf %319, %281 : vector<8x35xf32>
    %321 = arith.truncf %320 : vector<8x35xf32> to vector<8x35xbf16>
    %c2_134 = arith.constant 2 : index
    %c0_135 = arith.constant 0 : index
    %c0_136 = arith.constant 0 : index
    %322 = vector.load %arg12[%c2_134, %c0_135, %c0_136] : memref<5x35x35xbf16, #tpu.memory_space<vmem>>, vector<1x35x35xbf16>
    %323 = vector.shape_cast %322 : vector<1x35x35xbf16> to vector<35x35xbf16>
    %cst_137 = arith.constant dense<0.000000e+00> : vector<8x35xf32>
    %324 = tpu.matmul %321, %323, %cst_137 {dimension_numbers = #tpu.dot_dimension_numbers<[1], [0], [0], [1], [0, 0, 1, 1], [], []>} : vector<8x35xbf16>, vector<35x35xbf16>, vector<8x35xf32> -> vector<8x35xf32>
    %c2_138 = arith.constant 2 : index
    %c0_139 = arith.constant 0 : index
    %c0_140 = arith.constant 0 : index
    %325 = vector.load %arg13[%c2_138, %c0_139, %c0_140] : memref<5x1x35xf32, #tpu.memory_space<vmem>>, vector<1x1x35xf32>
    %326 = vector.shape_cast %325 : vector<1x1x35xf32> to vector<1x35xf32>
    %327 = vector.broadcast %326 : vector<1x35xf32> to vector<8x35xf32>
    %328 = arith.addf %324, %327 : vector<8x35xf32>
    %cst_141 = arith.constant 0.000000e+00 : f32
    %329 = vector.broadcast %cst_141 : f32 to vector<8x35xf32>
    %330 = arith.maximumf %328, %329 : vector<8x35xf32>
    %331 = vector.shape_cast %330 : vector<8x35xf32> to vector<1x8x35xf32>
    %c2_142 = arith.constant 2 : index
    %c0_143 = arith.constant 0 : index
    %c0_144 = arith.constant 0 : index
    %332 = vector.load %arg14[%c2_142, %c0_143, %c0_144] : memref<5x1x35xf32, #tpu.memory_space<vmem>>, vector<1x1x35xf32>
    %333 = vector.shape_cast %332 : vector<1x1x35xf32> to vector<1x35xf32>
    %c2_145 = arith.constant 2 : index
    %c0_146 = arith.constant 0 : index
    %c0_147 = arith.constant 0 : index
    %334 = vector.load %arg15[%c2_145, %c0_146, %c0_147] : memref<5x1x35xf32, #tpu.memory_space<vmem>>, vector<1x1x35xf32>
    %335 = vector.shape_cast %334 : vector<1x1x35xf32> to vector<1x35xf32>
    %336 = arith.mulf %331, %331 : vector<1x8x35xf32>
    %337 = tpu.concatenate %331, %336 in 2 : vector<1x8x35xf32>, vector<1x8x35xf32> -> vector<1x8x70xf32>
    %cst_148 = arith.constant dense<0.000000e+00> : vector<1x70xf32>
    %338 = vector.multi_reduction <add>, %337, %cst_148 [1] : vector<1x8x70xf32> to vector<1x70xf32>
    %339 = vector.shape_cast %338 : vector<1x70xf32> to vector<1x1x70xf32>
    %cst_149 = arith.constant 1.250000e-01 : f32
    %340 = vector.broadcast %cst_149 : f32 to vector<1x1x70xf32>
    %341 = arith.mulf %339, %340 : vector<1x1x70xf32>
    %342 = vector.extract_strided_slice %341 {offsets = [0, 0, 0], sizes = [1, 1, 35], strides = [1, 1, 1]} : vector<1x1x70xf32> to vector<1x1x35xf32>
    %343 = vector.extract_strided_slice %341 {offsets = [0, 0, 35], sizes = [1, 1, 35], strides = [1, 1, 1]} : vector<1x1x70xf32> to vector<1x1x35xf32>
    %344 = arith.mulf %342, %342 : vector<1x1x35xf32>
    %345 = arith.subf %343, %344 : vector<1x1x35xf32>
    %cst_150 = arith.constant 9.99999974E-6 : f32
    %346 = vector.broadcast %cst_150 : f32 to vector<1x1x35xf32>
    %347 = arith.addf %345, %346 : vector<1x1x35xf32>
    %348 = math.rsqrt %347 : vector<1x1x35xf32>
    %349 = vector.shape_cast %333 : vector<1x35xf32> to vector<1x1x35xf32>
    %350 = arith.mulf %348, %349 : vector<1x1x35xf32>
    %351 = arith.mulf %342, %350 : vector<1x1x35xf32>
    %352 = vector.shape_cast %335 : vector<1x35xf32> to vector<1x1x35xf32>
    %353 = arith.subf %352, %351 : vector<1x1x35xf32>
    %354 = vector.broadcast %350 : vector<1x1x35xf32> to vector<1x8x35xf32>
    %355 = arith.mulf %331, %354 : vector<1x8x35xf32>
    %356 = vector.broadcast %353 : vector<1x1x35xf32> to vector<1x8x35xf32>
    %357 = arith.addf %355, %356 : vector<1x8x35xf32>
    %358 = vector.shape_cast %357 : vector<1x8x35xf32> to vector<8x35xf32>
    %359 = arith.addf %358, %320 : vector<8x35xf32>
    %360 = arith.truncf %359 : vector<8x35xf32> to vector<8x35xbf16>
    %c3_151 = arith.constant 3 : index
    %c0_152 = arith.constant 0 : index
    %c0_153 = arith.constant 0 : index
    %361 = vector.load %arg12[%c3_151, %c0_152, %c0_153] : memref<5x35x35xbf16, #tpu.memory_space<vmem>>, vector<1x35x35xbf16>
    %362 = vector.shape_cast %361 : vector<1x35x35xbf16> to vector<35x35xbf16>
    %cst_154 = arith.constant dense<0.000000e+00> : vector<8x35xf32>
    %363 = tpu.matmul %360, %362, %cst_154 {dimension_numbers = #tpu.dot_dimension_numbers<[1], [0], [0], [1], [0, 0, 1, 1], [], []>} : vector<8x35xbf16>, vector<35x35xbf16>, vector<8x35xf32> -> vector<8x35xf32>
    %c3_155 = arith.constant 3 : index
    %c0_156 = arith.constant 0 : index
    %c0_157 = arith.constant 0 : index
    %364 = vector.load %arg13[%c3_155, %c0_156, %c0_157] : memref<5x1x35xf32, #tpu.memory_space<vmem>>, vector<1x1x35xf32>
    %365 = vector.shape_cast %364 : vector<1x1x35xf32> to vector<1x35xf32>
    %366 = vector.broadcast %365 : vector<1x35xf32> to vector<8x35xf32>
    %367 = arith.addf %363, %366 : vector<8x35xf32>
    %cst_158 = arith.constant 0.000000e+00 : f32
    %368 = vector.broadcast %cst_158 : f32 to vector<8x35xf32>
    %369 = arith.maximumf %367, %368 : vector<8x35xf32>
    %370 = vector.shape_cast %369 : vector<8x35xf32> to vector<1x8x35xf32>
    %c3_159 = arith.constant 3 : index
    %c0_160 = arith.constant 0 : index
    %c0_161 = arith.constant 0 : index
    %371 = vector.load %arg14[%c3_159, %c0_160, %c0_161] : memref<5x1x35xf32, #tpu.memory_space<vmem>>, vector<1x1x35xf32>
    %372 = vector.shape_cast %371 : vector<1x1x35xf32> to vector<1x35xf32>
    %c3_162 = arith.constant 3 : index
    %c0_163 = arith.constant 0 : index
    %c0_164 = arith.constant 0 : index
    %373 = vector.load %arg15[%c3_162, %c0_163, %c0_164] : memref<5x1x35xf32, #tpu.memory_space<vmem>>, vector<1x1x35xf32>
    %374 = vector.shape_cast %373 : vector<1x1x35xf32> to vector<1x35xf32>
    %375 = arith.mulf %370, %370 : vector<1x8x35xf32>
    %376 = tpu.concatenate %370, %375 in 2 : vector<1x8x35xf32>, vector<1x8x35xf32> -> vector<1x8x70xf32>
    %cst_165 = arith.constant dense<0.000000e+00> : vector<1x70xf32>
    %377 = vector.multi_reduction <add>, %376, %cst_165 [1] : vector<1x8x70xf32> to vector<1x70xf32>
    %378 = vector.shape_cast %377 : vector<1x70xf32> to vector<1x1x70xf32>
    %cst_166 = arith.constant 1.250000e-01 : f32
    %379 = vector.broadcast %cst_166 : f32 to vector<1x1x70xf32>
    %380 = arith.mulf %378, %379 : vector<1x1x70xf32>
    %381 = vector.extract_strided_slice %380 {offsets = [0, 0, 0], sizes = [1, 1, 35], strides = [1, 1, 1]} : vector<1x1x70xf32> to vector<1x1x35xf32>
    %382 = vector.extract_strided_slice %380 {offsets = [0, 0, 35], sizes = [1, 1, 35], strides = [1, 1, 1]} : vector<1x1x70xf32> to vector<1x1x35xf32>
    %383 = arith.mulf %381, %381 : vector<1x1x35xf32>
    %384 = arith.subf %382, %383 : vector<1x1x35xf32>
    %cst_167 = arith.constant 9.99999974E-6 : f32
    %385 = vector.broadcast %cst_167 : f32 to vector<1x1x35xf32>
    %386 = arith.addf %384, %385 : vector<1x1x35xf32>
    %387 = math.rsqrt %386 : vector<1x1x35xf32>
    %388 = vector.shape_cast %372 : vector<1x35xf32> to vector<1x1x35xf32>
    %389 = arith.mulf %387, %388 : vector<1x1x35xf32>
    %390 = arith.mulf %381, %389 : vector<1x1x35xf32>
    %391 = vector.shape_cast %374 : vector<1x35xf32> to vector<1x1x35xf32>
    %392 = arith.subf %391, %390 : vector<1x1x35xf32>
    %393 = vector.broadcast %389 : vector<1x1x35xf32> to vector<1x8x35xf32>
    %394 = arith.mulf %370, %393 : vector<1x8x35xf32>
    %395 = vector.broadcast %392 : vector<1x1x35xf32> to vector<1x8x35xf32>
    %396 = arith.addf %394, %395 : vector<1x8x35xf32>
    %397 = vector.shape_cast %396 : vector<1x8x35xf32> to vector<8x35xf32>
    %398 = arith.addf %397, %359 : vector<8x35xf32>
    %399 = arith.truncf %398 : vector<8x35xf32> to vector<8x35xbf16>
    %c4_168 = arith.constant 4 : index
    %c0_169 = arith.constant 0 : index
    %c0_170 = arith.constant 0 : index
    %400 = vector.load %arg12[%c4_168, %c0_169, %c0_170] : memref<5x35x35xbf16, #tpu.memory_space<vmem>>, vector<1x35x35xbf16>
    %401 = vector.shape_cast %400 : vector<1x35x35xbf16> to vector<35x35xbf16>
    %cst_171 = arith.constant dense<0.000000e+00> : vector<8x35xf32>
    %402 = tpu.matmul %399, %401, %cst_171 {dimension_numbers = #tpu.dot_dimension_numbers<[1], [0], [0], [1], [0, 0, 1, 1], [], []>} : vector<8x35xbf16>, vector<35x35xbf16>, vector<8x35xf32> -> vector<8x35xf32>
    %c4_172 = arith.constant 4 : index
    %c0_173 = arith.constant 0 : index
    %c0_174 = arith.constant 0 : index
    %403 = vector.load %arg13[%c4_172, %c0_173, %c0_174] : memref<5x1x35xf32, #tpu.memory_space<vmem>>, vector<1x1x35xf32>
    %404 = vector.shape_cast %403 : vector<1x1x35xf32> to vector<1x35xf32>
    %405 = vector.broadcast %404 : vector<1x35xf32> to vector<8x35xf32>
    %406 = arith.addf %402, %405 : vector<8x35xf32>
    %cst_175 = arith.constant 0.000000e+00 : f32
    %407 = vector.broadcast %cst_175 : f32 to vector<8x35xf32>
    %408 = arith.maximumf %406, %407 : vector<8x35xf32>
    %409 = vector.shape_cast %408 : vector<8x35xf32> to vector<1x8x35xf32>
    %c4_176 = arith.constant 4 : index
    %c0_177 = arith.constant 0 : index
    %c0_178 = arith.constant 0 : index
    %410 = vector.load %arg14[%c4_176, %c0_177, %c0_178] : memref<5x1x35xf32, #tpu.memory_space<vmem>>, vector<1x1x35xf32>
    %411 = vector.shape_cast %410 : vector<1x1x35xf32> to vector<1x35xf32>
    %c4_179 = arith.constant 4 : index
    %c0_180 = arith.constant 0 : index
    %c0_181 = arith.constant 0 : index
    %412 = vector.load %arg15[%c4_179, %c0_180, %c0_181] : memref<5x1x35xf32, #tpu.memory_space<vmem>>, vector<1x1x35xf32>
    %413 = vector.shape_cast %412 : vector<1x1x35xf32> to vector<1x35xf32>
    %414 = arith.mulf %409, %409 : vector<1x8x35xf32>
    %415 = tpu.concatenate %409, %414 in 2 : vector<1x8x35xf32>, vector<1x8x35xf32> -> vector<1x8x70xf32>
    %cst_182 = arith.constant dense<0.000000e+00> : vector<1x70xf32>
    %416 = vector.multi_reduction <add>, %415, %cst_182 [1] : vector<1x8x70xf32> to vector<1x70xf32>
    %417 = vector.shape_cast %416 : vector<1x70xf32> to vector<1x1x70xf32>
    %cst_183 = arith.constant 1.250000e-01 : f32
    %418 = vector.broadcast %cst_183 : f32 to vector<1x1x70xf32>
    %419 = arith.mulf %417, %418 : vector<1x1x70xf32>
    %420 = vector.extract_strided_slice %419 {offsets = [0, 0, 0], sizes = [1, 1, 35], strides = [1, 1, 1]} : vector<1x1x70xf32> to vector<1x1x35xf32>
    %421 = vector.extract_strided_slice %419 {offsets = [0, 0, 35], sizes = [1, 1, 35], strides = [1, 1, 1]} : vector<1x1x70xf32> to vector<1x1x35xf32>
    %422 = arith.mulf %420, %420 : vector<1x1x35xf32>
    %423 = arith.subf %421, %422 : vector<1x1x35xf32>
    %cst_184 = arith.constant 9.99999974E-6 : f32
    %424 = vector.broadcast %cst_184 : f32 to vector<1x1x35xf32>
    %425 = arith.addf %423, %424 : vector<1x1x35xf32>
    %426 = math.rsqrt %425 : vector<1x1x35xf32>
    %427 = vector.shape_cast %411 : vector<1x35xf32> to vector<1x1x35xf32>
    %428 = arith.mulf %426, %427 : vector<1x1x35xf32>
    %429 = arith.mulf %420, %428 : vector<1x1x35xf32>
    %430 = vector.shape_cast %413 : vector<1x35xf32> to vector<1x1x35xf32>
    %431 = arith.subf %430, %429 : vector<1x1x35xf32>
    %432 = vector.broadcast %428 : vector<1x1x35xf32> to vector<1x8x35xf32>
    %433 = arith.mulf %409, %432 : vector<1x8x35xf32>
    %434 = vector.broadcast %431 : vector<1x1x35xf32> to vector<1x8x35xf32>
    %435 = arith.addf %433, %434 : vector<1x8x35xf32>
    %436 = vector.shape_cast %435 : vector<1x8x35xf32> to vector<8x35xf32>
    %437 = arith.addf %436, %398 : vector<8x35xf32>
    %c0_185 = arith.constant 0 : index
    %c0_186 = arith.constant 0 : index
    %438 = vector.load %arg16[%c0_185, %c0_186] : memref<35x1xf32, #tpu.memory_space<vmem>>, vector<35x1xf32>
    %cst_187 = arith.constant dense<0.000000e+00> : vector<8x1xf32>
    %439 = tpu.matmul %437, %438, %cst_187 {dimension_numbers = #tpu.dot_dimension_numbers<[1], [0], [0], [1], [0, 0, 1, 1], [], []>} : vector<8x35xf32>, vector<35x1xf32>, vector<8x1xf32> -> vector<8x1xf32>
    %c0_188 = arith.constant 0 : index
    %c0_189 = arith.constant 0 : index
    %440 = vector.load %arg17[%c0_188, %c0_189] : memref<1x1xf32, #tpu.memory_space<vmem>>, vector<1x1xf32>
    %441 = vector.broadcast %440 : vector<1x1xf32> to vector<8x1xf32>
    %442 = arith.addf %439, %441 : vector<8x1xf32>
    %443 = arith.negf %442 : vector<8x1xf32>
    %444 = math.exp %443 : vector<8x1xf32>
    %cst_190 = arith.constant 1.000000e+00 : f32
    %445 = vector.broadcast %cst_190 : f32 to vector<8x1xf32>
    %446 = arith.addf %445, %444 : vector<8x1xf32>
    %447 = arith.divf %445, %446 : vector<8x1xf32>
    %c0_191 = arith.constant 0 : index
    %c0_192 = arith.constant 0 : index
    %448 = vector.load %arg18[%c0_191, %c0_192] : memref<8x1xf32, #tpu.memory_space<vmem>>, vector<8x1xf32>
    tpu.vector_store %arg18[%c0_191, %c0_192], %447 {strides = array<i32>} : memref<8x1xf32, #tpu.memory_space<vmem>>, vector<8x1xf32>,
    return
  }
}

</mosaic_0001>

<llo_original>
// kernel: event_predictor_forward.1
$region0: #{event_predictor_forward.1}
  #allocation0 [shape = 'u32[]', space=smem, size = 0x4, offset = 0x4, fixed_abs, tag = 'smem constant byte address 0x4 - core index']
  #allocation1 [shape = 'u32[144,128]{1,0:T(1,128)}', space=vmem, size = 0x12000, scoped, tag = 'internal scratch']
  #allocation2 [shape = 'f32[1,1]{1,0:T(1,128)S(1)}', space=vmem, size = 0x200, scoped, tag = 'scoped memory for event_predictor_forward.1']
  %s0 = inlined_call_operand.vmem [shape: s32[8,1], index: 0, kind: input, shape index: {}]
  %s1 = inlined_call_operand.vmem [shape: s32[24,1], index: 1, kind: input, shape index: {}]
  %s2 = inlined_call_operand.vmem [shape: bf16[7,30], index: 2, kind: input, shape index: {}]
  %s3 = inlined_call_operand.vmem [shape: bf16[7,30], index: 3, kind: input, shape index: {}]
  %s4 = inlined_call_operand.vmem [shape: f32[1,30], index: 4, kind: input, shape index: {}]
  %s5 = inlined_call_operand.vmem [shape: bf16[7,35], index: 5, kind: input, shape index: {}]
  %s6 = inlined_call_operand.vmem [shape: bf16[5,30,30], index: 6, kind: input, shape index: {}]
  %s7 = inlined_call_operand.vmem [shape: f32[5,1,30], index: 7, kind: input, shape index: {}]
  %s8 = inlined_call_operand.vmem [shape: f32[5,1,30], index: 8, kind: input, shape index: {}]
  %s9 = inlined_call_operand.vmem [shape: f32[5,1,30], index: 9, kind: input, shape index: {}]
  %s10 = inlined_call_operand.vmem [shape: bf16[30,35], index: 10, kind: input, shape index: {}]
  %s11 = inlined_call_operand.vmem [shape: f32[1,35], index: 11, kind: input, shape index: {}]
  %s12 = inlined_call_operand.vmem [shape: bf16[5,35,35], index: 12, kind: input, shape index: {}]
  %s13 = inlined_call_operand.vmem [shape: f32[5,1,35], index: 13, kind: input, shape index: {}]
  %s14 = inlined_call_operand.vmem [shape: f32[5,1,35], index: 14, kind: input, shape index: {}]
  %s15 = inlined_call_operand.vmem [shape: f32[5,1,35], index: 15, kind: input, shape index: {}]
  %s16 = inlined_call_operand.vmem [shape: f32[35,1], index: 16, kind: input, shape index: {}]
  %s17 = inlined_call_operand.<no memory space> [shape: f32[1,1], index: 17, kind: input, shape index: {}]
  %s18 = inlined_call_operand.vmem [shape: f32[8,1], index: 18, kind: output, shape index: {}]
  %s19 = sld [smem:[#allocation0]]
  $region82: #{event_predictor_forward.1} parent=0
    _
  %s21 = ssub.s32 1, %s19
  %s22 = scalar_select 0, %s21, %s19
  %v23 = vstv %s17
  %24 = vst [vmem:[#allocation2] sm:$0x1] %v23
  // Predicated region
  $region2: #{event_predictor_forward.1} parent=0 // pred_check
    _
  $region3: #{event_predictor_forward.1} parent=0 // pred_check_branch
    %26 = sbr.rel (0) target = $region5
  $region4: #{event_predictor_forward.1} parent=0 // pred_region
    _
  $region5: #{event_predictor_forward.1} parent=0 // pred_fallthru
    _
  // Predicated region
  $region6: #{event_predictor_forward.1} parent=0 // pred_check
    _
  $region7: #{event_predictor_forward.1} parent=0 // pred_check_branch
    %28 = sbr.rel (0) target = $region9
  $region8: #{event_predictor_forward.1} parent=0 // pred_region
    _
  $region9: #{event_predictor_forward.1} parent=0 // pred_fallthru
    _
  // Predicated region
  $region10: #{event_predictor_forward.1} parent=0 // pred_check
    _
  $region11: #{event_predictor_forward.1} parent=0 // pred_check_branch
    %30 = sbr.rel (0) target = $region13
  $region12: #{event_predictor_forward.1} parent=0 // pred_region
    _
  $region13: #{event_predictor_forward.1} parent=0 // pred_fallthru
    _
  // Predicated region
  $region14: #{event_predictor_forward.1} parent=0 // pred_check
    _
  $region15: #{event_predictor_forward.1} parent=0 // pred_check_branch
    %32 = sbr.rel (0) target = $region17
  $region16: #{event_predictor_forward.1} parent=0 // pred_region
    _
  $region17: #{event_predictor_forward.1} parent=0 // pred_fallthru
    _
  // Predicated region
  $region18: #{event_predictor_forward.1} parent=0 // pred_check
    _
  $region19: #{event_predictor_forward.1} parent=0 // pred_check_branch
    %34 = sbr.rel (0) target = $region21
  $region20: #{event_predictor_forward.1} parent=0 // pred_region
    _
  $region21: #{event_predictor_forward.1} parent=0 // pred_fallthru
    _
  // Predicated region
  $region22: #{event_predictor_forward.1} parent=0 // pred_check
    _
  $region23: #{event_predictor_forward.1} parent=0 // pred_check_branch
    %36 = sbr.rel (0) target = $region25
  $region24: #{event_predictor_forward.1} parent=0 // pred_region
    _
  $region25: #{event_predictor_forward.1} parent=0 // pred_fallthru
    _
  // Predicated region
  $region26: #{event_predictor_forward.1} parent=0 // pred_check
    _
  $region27: #{event_predictor_forward.1} parent=0 // pred_check_branch
    %38 = sbr.rel (0) target = $region29
  $region28: #{event_predictor_forward.1} parent=0 // pred_region
    _
  $region29: #{event_predictor_forward.1} parent=0 // pred_fallthru
    _
  // Predicated region
  $region30: #{event_predictor_forward.1} parent=0 // pred_check
    _
  $region31: #{event_predictor_forward.1} parent=0 // pred_check_branch
    %40 = sbr.rel (0) target = $region33
  $region32: #{event_predictor_forward.1} parent=0 // pred_region
    _
  $region33: #{event_predictor_forward.1} parent=0 // pred_fallthru
    _
  // Predicated region
  $region34: #{event_predictor_forward.1} parent=0 // pred_check
    _
  $region35: #{event_predictor_forward.1} parent=0 // pred_check_branch
    %42 = sbr.rel (0) target = $region37
  $region36: #{event_predictor_forward.1} parent=0 // pred_region
    _
  $region37: #{event_predictor_forward.1} parent=0 // pred_fallthru
    _
  // Predicated region
  $region38: #{event_predictor_forward.1} parent=0 // pred_check
    _
  $region39: #{event_predictor_forward.1} parent=0 // pred_check_branch
    %44 = sbr.rel (0) target = $region41
  $region40: #{event_predictor_forward.1} parent=0 // pred_region
    _
  $region41: #{event_predictor_forward.1} parent=0 // pred_fallthru
    _
  // Predicated region
  $region42: #{event_predictor_forward.1} parent=0 // pred_check
    _
  $region43: #{event_predictor_forward.1} parent=0 // pred_check_branch
    %46 = sbr.rel (0) target = $region45
  $region44: #{event_predictor_forward.1} parent=0 // pred_region
    _
  $region45: #{event_predictor_forward.1} parent=0 // pred_fallthru
    _
  // Predicated region
  $region46: #{event_predictor_forward.1} parent=0 // pred_check
    _
  $region47: #{event_predictor_forward.1} parent=0 // pred_check_branch
    %48 = sbr.rel (0) target = $region49
  $region48: #{event_predictor_forward.1} parent=0 // pred_region
    _
  $region49: #{event_predictor_forward.1} parent=0 // pred_fallthru
    _
  // Predicated region
  $region50: #{event_predictor_forward.1} parent=0 // pred_check
    _
  $region51: #{event_predictor_forward.1} parent=0 // pred_check_branch
    %50 = sbr.rel (0) target = $region53
  $region52: #{event_predictor_forward.1} parent=0 // pred_region
    _
  $region53: #{event_predictor_forward.1} parent=0 // pred_fallthru
    _
  // Predicated region
  $region54: #{event_predictor_forward.1} parent=0 // pred_check
    _
  $region55: #{event_predictor_forward.1} parent=0 // pred_check_branch
    %52 = sbr.rel (0) target = $region57
  $region56: #{event_predictor_forward.1} parent=0 // pred_region
    _
  $region57: #{event_predictor_forward.1} parent=0 // pred_fallthru
    _
  // Predicated region
  $region58: #{event_predictor_forward.1} parent=0 // pred_check
    _
  $region59: #{event_predictor_forward.1} parent=0 // pred_check_branch
    %54 = sbr.rel (0) target = $region61
  $region60: #{event_predictor_forward.1} parent=0 // pred_region
    _
  $region61: #{event_predictor_forward.1} parent=0 // pred_fallthru
    _
  // Predicated region
  $region62: #{event_predictor_forward.1} parent=0 // pred_check
    _
  $region63: #{event_predictor_forward.1} parent=0 // pred_check_branch
    %56 = sbr.rel (0) target = $region65
  $region64: #{event_predictor_forward.1} parent=0 // pred_region
    _
  $region65: #{event_predictor_forward.1} parent=0 // pred_fallthru
    _
  // Predicated region
  $region66: #{event_predictor_forward.1} parent=0 // pred_check
    _
  $region67: #{event_predictor_forward.1} parent=0 // pred_check_branch
    %58 = sbr.rel (0) target = $region69
  $region68: #{event_predictor_forward.1} parent=0 // pred_region
    _
  $region69: #{event_predictor_forward.1} parent=0 // pred_fallthru
    _
  // Predicated region
  $region70: #{event_predictor_forward.1} parent=0 // pred_check
    _
  $region71: #{event_predictor_forward.1} parent=0 // pred_check_branch
    %60 = sbr.rel (0) target = $region73
  $region72: #{event_predictor_forward.1} parent=0 // pred_region
    _
  $region73: #{event_predictor_forward.1} parent=0 // pred_fallthru
    _
  %v62 = vlaneseq
  %v63 = vand.u32 %v62, 127
  %v64 = vld [vmem:[%s0] sm:$0xff]
  %65 = vset.pattern.permute.xlu0 0
  %66 = vperm.xlu0 %65, %v64
  %v67 = vpop.permute.xlu0 %66
  %vm68 = vcmp.eq.s32.totalorder %v67, %v63
  %v69 = vsel %vm68, 1, 0
  %v70 = vcvt.s32.f32 %v69
  %v71 = vpack.c.bf16 %v70, %v70
  %v72 = vld [vmem:[%s1] sm:$0xff]
  %v73 = vld [vmem:[%s1 + $0x8] sm:$0xff]
  %v74 = vld [vmem:[%s1 + $0x10] sm:$0xff]
  %75 = vset.pattern.permute.xlu0 0
  %76 = vperm.xlu0 %75, %v72
  %v77 = vpop.permute.xlu0 %76
  %78 = vset.pattern.permute.xlu0 0
  %79 = vperm.xlu0 %78, %v73
  %v80 = vpop.permute.xlu0 %79
  %81 = vset.pattern.permute.xlu0 0
  %82 = vperm.xlu0 %81, %v74
  %v83 = vpop.permute.xlu0 %82
  %vm84 = vcmp.eq.s32.totalorder %v77, %v63
  %vm85 = vcmp.eq.s32.totalorder %v80, %v63
  %vm86 = vcmp.eq.s32.totalorder %v83, %v63
  %v87 = vsel %vm84, 1, 0
  %v88 = vsel %vm85, 1, 0
  %v89 = vsel %vm86, 1, 0
  %v90 = vcvt.s32.f32 %v87
  %v91 = vcvt.s32.f32 %v88
  %v92 = vcvt.s32.f32 %v89
  %v93 = vpack.c.bf16 %v91, %v90
  %v94 = vpack.c.bf16 %v92, %v92
  %v95 = vld [vmem:[%s2] sm:$0xf]
  %v96 = vld [vmem:[%s4] sm:$0x1]
  %v98 = vlaneseq
  %v99 = vshrl.u32 %v98, 7
  %v100 = vsub.s32 0, %v99
  %v101 = vrot.slane %v96, %v100
  %vm103 = vcmask 56320
  %v105 = vsel %vm103, %v71, 0
  %vm107 = vcmask 1042432
  %vm108 = vcmask 1043456
  %v109 = vsel %vm107, 4294967295, 65535
  %v110 = vsel %vm108, %v109, 0
  %v112 = vand.u32 %v95, %v110
  %114 = vmatprep.subr.bf16.mxu0 0
  %115 = vmatpush1.bf16.msra.mxu0 %v112
  %116 = vmatprep.subr.bf16.mxu0 0
  %117 = vmatpush1.bf16.msra.mxu0 0
  %118 = vmatprep.subr.bf16.mxu0 0
  %119 = vmatpush1.bf16.msra.mxu0 0
  %120 = vmatprep.subr.bf16.mxu0 0
  %121 = vmatpush1.bf16.msra.mxu0 0
  %122 = vmatprep.subr.bf16.mxu0 0
  %123 = vmatpush1.bf16.msra.mxu0 0
  %124 = vmatprep.subr.bf16.mxu0 0
  %125 = vmatpush1.bf16.msra.mxu0 0
  %126 = vmatprep.subr.bf16.mxu0 0
  %127 = vmatpush1.bf16.msra.mxu0 0
  %128 = vmatprep.subr.bf16.mxu0 0
  %129 = vmatpush1.bf16.msra.mxu0 0
  %130 = vmatprep.subr.bf16.mxu0 0
  %131 = vmatpush1.bf16.msra.mxu0 0
  %132 = vmatprep.subr.bf16.mxu0 0
  %133 = vmatpush1.bf16.msra.mxu0 0
  %134 = vmatprep.subr.bf16.mxu0 0
  %135 = vmatpush1.bf16.msra.mxu0 0
  %136 = vmatprep.subr.bf16.mxu0 0
  %137 = vmatpush1.bf16.msra.mxu0 0
  %138 = vmatprep.subr.bf16.mxu0 0
  %139 = vmatpush1.bf16.msra.mxu0 0
  %140 = vmatprep.subr.bf16.mxu0 0
  %141 = vmatpush1.bf16.msra.mxu0 0
  %142 = vmatprep.subr.bf16.mxu0 0
  %143 = vmatpush1.bf16.msra.mxu0 0
  %144 = vmatprep.subr.bf16.mxu0 0
  %145 = vmatpush1.bf16.msra.mxu0 0
  %146 = vmatprep.mubr.bf16.mxu0 0
  %147 = vmatmul.mubr.bf16.gmra.mrb[0].mxu0 %v105
  %v148 = vpop.f32.mrb[0].mxu0
  %v149 = vadd.f32 %v101, %v148
  %v150 = vpop.f32.mrb[0].mxu0
  %v151 = vpop.f32.mrb[0].mxu0
  %v152 = vpop.f32.mrb[0].mxu0
  %153 = vdwg.mxu0
  %v154 = vld [vmem:[%s5] sm:$0xf]
  %v155 = vld [vmem:[%s3] sm:$0xf]
  %v157 = vsel %vm103, %v93, 0
  %v160 = vsel %vm103, %v94, 0
  %v163 = vand.u32 %v155, %v110
  %165 = vmatprep.subr.bf16.mxu0 0
  %166 = vmatpush1.bf16.msra.mxu0 %v163
  %167 = vmatprep.subr.bf16.mxu0 0
  %168 = vmatpush1.bf16.msra.mxu0 0
  %169 = vmatprep.subr.bf16.mxu0 0
  %170 = vmatpush1.bf16.msra.mxu0 0
  %171 = vmatprep.subr.bf16.mxu0 0
  %172 = vmatpush1.bf16.msra.mxu0 0
  %173 = vmatprep.subr.bf16.mxu0 0
  %174 = vmatpush1.bf16.msra.mxu0 0
  %175 = vmatprep.subr.bf16.mxu0 0
  %176 = vmatpush1.bf16.msra.mxu0 0
  %177 = vmatprep.subr.bf16.mxu0 0
  %178 = vmatpush1.bf16.msra.mxu0 0
  %179 = vmatprep.subr.bf16.mxu0 0
  %180 = vmatpush1.bf16.msra.mxu0 0
  %181 = vmatprep.subr.bf16.mxu0 0
  %182 = vmatpush1.bf16.msra.mxu0 0
  %183 = vmatprep.subr.bf16.mxu0 0
  %184 = vmatpush1.bf16.msra.mxu0 0
  %185 = vmatprep.subr.bf16.mxu0 0
  %186 = vmatpush1.bf16.msra.mxu0 0
  %187 = vmatprep.subr.bf16.mxu0 0
  %188 = vmatpush1.bf16.msra.mxu0 0
  %189 = vmatprep.subr.bf16.mxu0 0
  %190 = vmatpush1.bf16.msra.mxu0 0
  %191 = vmatprep.subr.bf16.mxu0 0
  %192 = vmatpush1.bf16.msra.mxu0 0
  %193 = vmatprep.subr.bf16.mxu0 0
  %194 = vmatpush1.bf16.msra.mxu0 0
  %195 = vmatprep.subr.bf16.mxu0 0
  %196 = vmatpush1.bf16.msra.mxu0 0
  %197 = vmatprep.mubr.bf16.mxu0 0
  %198 = vmatmul.mubr.bf16.gmra.mrb[0].mxu0 %v157
  %v199 = vpop.f32.mrb[0].mxu0
  %v200 = vadd.f32 0.0, %v199
  %v201 = vpop.f32.mrb[0].mxu0
  %v202 = vpop.f32.mrb[0].mxu0
  %v203 = vadd.f32 0.0, %v202
  %v204 = vpop.f32.mrb[0].mxu0
  %205 = vmatprep.mubr.bf16.mxu0 0
  %206 = vmatmul.mubr.bf16.gmra.mrb[0].mxu0 %v160
  %v207 = vpop.f32.mrb[0].mxu0
  %v208 = vadd.f32 0.0, %v207
  %v209 = vpop.f32.mrb[0].mxu0
  %v210 = vpop.f32.mrb[0].mxu0
  %v211 = vpop.f32.mrb[0].mxu0
  %212 = vdwg.mxu0
  %v213 = vadd.f32 %v200, %v149
  %v214 = vadd.f32 %v203, %v149
  %v215 = vadd.f32 %v208, %v149
  %v216 = vpack.c.bf16 %v214, %v213
  %v217 = vpack.c.bf16 %v215, %v215
  %v218 = vld [vmem:[%s6] sm:$0xf]
  %v219 = vld [vmem:[%s6 + $0x4] sm:$0xf]
  %v220 = vld [vmem:[%s6 + $0x8] sm:$0xf]
  %v221 = vld [vmem:[%s6 + $0xc] sm:$0x7]
  %v222 = vld [vmem:[%s7] sm:$0x1]
  %v224 = vlaneseq
  %v225 = vshrl.u32 %v224, 7
  %v226 = vsub.s32 0, %v225
  %v227 = vrot.slane %v222, %v226
  %v233 = vunpack.c.l.b16 %v218
  %v234 = vunpack.c.l.b16 %v219
  %v235 = vunpack.c.l.b16 %v220
  %v236 = vunpack.c.l.b16 %v221
  %v237 = vpack.c.b16 %v234, %v233
  %v238 = vpack.c.b16 %v236, %v235
  %vm240 = vcmask 244736
  %v242 = vsel %vm240, %v216, 0
  %v245 = vsel %vm240, %v217, 0
  %vm247 = vcmask 1046528
  %v249 = vsel %vm247, %v238, 0
  %251 = vmatprep.subr.bf16.mxu0 0
  %252 = vmatpush1.bf16.msra.mxu0 %v237
  %253 = vmatprep.subr.bf16.mxu0 0
  %254 = vmatpush1.bf16.msra.mxu0 %v249
  %255 = vmatprep.subr.bf16.mxu0 0
  %256 = vmatpush1.bf16.msra.mxu0 0
  %257 = vmatprep.subr.bf16.mxu0 0
  %258 = vmatpush1.bf16.msra.mxu0 0
  %259 = vmatprep.subr.bf16.mxu0 0
  %260 = vmatpush1.bf16.msra.mxu0 0
  %261 = vmatprep.subr.bf16.mxu0 0
  %262 = vmatpush1.bf16.msra.mxu0 0
  %263 = vmatprep.subr.bf16.mxu0 0
  %264 = vmatpush1.bf16.msra.mxu0 0
  %265 = vmatprep.subr.bf16.mxu0 0
  %266 = vmatpush1.bf16.msra.mxu0 0
  %267 = vmatprep.subr.bf16.mxu0 0
  %268 = vmatpush1.bf16.msra.mxu0 0
  %269 = vmatprep.subr.bf16.mxu0 0
  %270 = vmatpush1.bf16.msra.mxu0 0
  %271 = vmatprep.subr.bf16.mxu0 0
  %272 = vmatpush1.bf16.msra.mxu0 0
  %273 = vmatprep.subr.bf16.mxu0 0
  %274 = vmatpush1.bf16.msra.mxu0 0
  %275 = vmatprep.subr.bf16.mxu0 0
  %276 = vmatpush1.bf16.msra.mxu0 0
  %277 = vmatprep.subr.bf16.mxu0 0
  %278 = vmatpush1.bf16.msra.mxu0 0
  %279 = vmatprep.subr.bf16.mxu0 0
  %280 = vmatpush1.bf16.msra.mxu0 0
  %281 = vmatprep.subr.bf16.mxu0 0
  %282 = vmatpush1.bf16.msra.mxu0 0
  %283 = vmatprep.mubr.bf16.mxu0 0
  %284 = vmatmul.mubr.bf16.gmra.mrb[0].mxu0 %v242
  %v285 = vpop.f32.mrb[0].mxu0
  %v286 = vadd.f32 %v227, %v285
  %v287 = vpop.f32.mrb[0].mxu0
  %v288 = vpop.f32.mrb[0].mxu0
  %v289 = vadd.f32 %v227, %v288
  %v290 = vpop.f32.mrb[0].mxu0
  %291 = vmatprep.mubr.bf16.mxu0 0
  %292 = vmatmul.mubr.bf16.gmra.mrb[0].mxu0 %v245
  %v293 = vpop.f32.mrb[0].mxu0
  %v294 = vadd.f32 %v227, %v293
  %v295 = vpop.f32.mrb[0].mxu0
  %v296 = vpop.f32.mrb[0].mxu0
  %v297 = vpop.f32.mrb[0].mxu0
  %298 = vdwg.mxu0
  %v299 = vmax.f32 %v286, 0.0
  %v300 = vmax.f32 %v289, 0.0
  %v301 = vmax.f32 %v294, 0.0
  %v302 = vld [vmem:[%s8] sm:$0x1]
  %v303 = vld [vmem:[%s9] sm:$0x1]
  %v304 = vmul.f32 %v299, %v299
  %v305 = vmul.f32 %v300, %v300
  %v306 = vmul.f32 %v301, %v301
  %310 = vrot.lane.b32.xlu0 %v304, 30
  %v311 = vpop.permute.xlu0 %310
  %312 = vrot.lane.b32.xlu0 %v305, 30
  %v313 = vpop.permute.xlu0 %312
  %314 = vrot.lane.b32.xlu0 %v306, 30
  %v315 = vpop.permute.xlu0 %314
  %v319 = vsel %vm240, %v299, %v311
  %v320 = vsel %vm240, %v300, %v313
  %v321 = vsel %vm240, %v301, %v315
  %vm322 = vcmask 490496
  %v323 = vsel %vm322, %v319, 0.0
  %v324 = vrot.slane %v323, 4
  %v325 = vadd.f32 %v323, %v324
  %v326 = vrot.slane %v325, 2
  %v327 = vadd.f32 %v325, %v326
  %v328 = vrot.slane %v327, 1
  %v329 = vadd.f32 %v327, %v328
  %v330 = vsel %vm322, %v320, 0.0
  %v331 = vrot.slane %v330, 4
  %v332 = vadd.f32 %v330, %v331
  %v333 = vrot.slane %v332, 2
  %v334 = vadd.f32 %v332, %v333
  %v335 = vrot.slane %v334, 1
  %v336 = vadd.f32 %v334, %v335
  %v337 = vsel %vm322, %v321, 0.0
  %v338 = vrot.slane %v337, 4
  %v339 = vadd.f32 %v337, %v338
  %v340 = vrot.slane %v339, 2
  %v341 = vadd.f32 %v339, %v340
  %v342 = vrot.slane %v341, 1
  %v343 = vadd.f32 %v341, %v342
  %v344 = vmul.f32 %v329, 0.125
  %v345 = vmul.f32 %v336, 0.125
  %v346 = vmul.f32 %v343, 0.125
  %v347 = vmul.f32 %v344, %v344
  %v348 = vmul.f32 %v345, %v345
  %v349 = vmul.f32 %v346, %v346
  %353 = vrot.lane.b32.xlu0 %v347, 30
  %v354 = vpop.permute.xlu0 %353
  %355 = vrot.lane.b32.xlu0 %v348, 30
  %v356 = vpop.permute.xlu0 %355
  %357 = vrot.lane.b32.xlu0 %v349, 30
  %v358 = vpop.permute.xlu0 %357
  %v362 = vsub.f32 %v344, %v354
  %v363 = vsub.f32 %v345, %v356
  %v364 = vsub.f32 %v346, %v358
  %v365 = vadd.f32 %v362, 1e-05
  %v366 = vadd.f32 %v363, 1e-05
  %v367 = vadd.f32 %v364, 1e-05
  %v368 = vrsqrt.pop %v365
  %v369 = vrsqrt.pop %v366
  %v370 = vrsqrt.pop %v367
  %v372 = vlaneseq
  %v373 = vshrl.u32 %v372, 7
  %v374 = vsub.s32 0, %v373
  %v375 = vrot.slane %v302, %v374
  %376 = vrot.lane.b32.xlu0 %v375, 30
  %v377 = vpop.permute.xlu0 %376
  %v379 = vmul.f32 %v368, %v377
  %v380 = vmul.f32 %v369, %v377
  %v381 = vmul.f32 %v370, %v377
  %385 = vrot.lane.b32.xlu0 %v379, 98
  %v386 = vpop.permute.xlu0 %385
  %387 = vrot.lane.b32.xlu0 %v380, 98
  %v388 = vpop.permute.xlu0 %387
  %389 = vrot.lane.b32.xlu0 %v381, 98
  %v390 = vpop.permute.xlu0 %389
  %v394 = vmul.f32 %v344, %v386
  %v395 = vmul.f32 %v345, %v388
  %v396 = vmul.f32 %v346, %v390
  %v397 = vsub.f32 %v303, %v394
  %v398 = vsub.f32 %v303, %v395
  %v399 = vsub.f32 %v303, %v396
  %v400 = vlaneseq
  %v401 = vshrl.u32 %v400, 7
  %v402 = vsub.s32 0, %v401
  %v403 = vrot.slane %v379, %v402
  %v404 = vlaneseq
  %v405 = vshrl.u32 %v404, 7
  %v406 = vsub.s32 0, %v405
  %v407 = vrot.slane %v380, %v406
  %v408 = vlaneseq
  %v409 = vshrl.u32 %v408, 7
  %v410 = vsub.s32 0, %v409
  %v411 = vrot.slane %v381, %v410
  %415 = vrot.lane.b32.xlu0 %v403, 98
  %v416 = vpop.permute.xlu0 %415
  %417 = vrot.lane.b32.xlu0 %v407, 98
  %v418 = vpop.permute.xlu0 %417
  %419 = vrot.lane.b32.xlu0 %v411, 98
  %v420 = vpop.permute.xlu0 %419
  %v424 = vmul.f32 %v299, %v416
  %v425 = vmul.f32 %v300, %v418
  %v426 = vmul.f32 %v301, %v420
  %v430 = vlaneseq
  %v431 = vshrl.u32 %v430, 7
  %v432 = vsub.s32 0, %v431
  %v433 = vrot.slane %v397, %v432
  %v434 = vlaneseq
  %v435 = vshrl.u32 %v434, 7
  %v436 = vsub.s32 0, %v435
  %v437 = vrot.slane %v398, %v436
  %v438 = vlaneseq
  %v439 = vshrl.u32 %v438, 7
  %v440 = vsub.s32 0, %v439
  %v441 = vrot.slane %v399, %v440
  %v445 = vadd.f32 %v424, %v433
  %v446 = vadd.f32 %v425, %v437
  %v447 = vadd.f32 %v426, %v441
  %v448 = vadd.f32 %v445, %v213
  %v449 = vadd.f32 %v446, %v214
  %v450 = vadd.f32 %v447, %v215
  %v451 = vpack.c.bf16 %v449, %v448
  %v452 = vpack.c.bf16 %v450, %v450
  %s453 = scalar_lea.vmem %s6, 16
  %v454 = vld [vmem:[%s453] sm:$0xf]
  %v455 = vld [vmem:[%s453 + $0x4] sm:$0xf]
  %v456 = vld [vmem:[%s453 + $0x8] sm:$0xf]
  %v457 = vld [vmem:[%s453 + $0xc] sm:$0x7]
  %s458 = scalar_lea.vmem %s7, 1
  %v459 = vld [vmem:[%s458] sm:$0x1]
  %v461 = vlaneseq
  %v462 = vshrl.u32 %v461, 7
  %v463 = vsub.s32 0, %v462
  %v464 = vrot.slane %v459, %v463
  %v470 = vunpack.c.l.b16 %v454
  %v471 = vunpack.c.l.b16 %v455
  %v472 = vunpack.c.l.b16 %v456
  %v473 = vunpack.c.l.b16 %v457
  %v474 = vpack.c.b16 %v471, %v470
  %v475 = vpack.c.b16 %v473, %v472
  %v478 = vsel %vm240, %v451, 0
  %v481 = vsel %vm240, %v452, 0
  %v484 = vsel %vm247, %v475, 0
  %486 = vmatprep.subr.bf16.mxu0 0
  %487 = vmatpush1.bf16.msra.mxu0 %v474
  %488 = vmatprep.subr.bf16.mxu0 0
  %489 = vmatpush1.bf16.msra.mxu0 %v484
  %490 = vmatprep.subr.bf16.mxu0 0
  %491 = vmatpush1.bf16.msra.mxu0 0
  %492 = vmatprep.subr.bf16.mxu0 0
  %493 = vmatpush1.bf16.msra.mxu0 0
  %494 = vmatprep.subr.bf16.mxu0 0
  %495 = vmatpush1.bf16.msra.mxu0 0
  %496 = vmatprep.subr.bf16.mxu0 0
  %497 = vmatpush1.bf16.msra.mxu0 0
  %498 = vmatprep.subr.bf16.mxu0 0
  %499 = vmatpush1.bf16.msra.mxu0 0
  %500 = vmatprep.subr.bf16.mxu0 0
  %501 = vmatpush1.bf16.msra.mxu0 0
  %502 = vmatprep.subr.bf16.mxu0 0
  %503 = vmatpush1.bf16.msra.mxu0 0
  %504 = vmatprep.subr.bf16.mxu0 0
  %505 = vmatpush1.bf16.msra.mxu0 0
  %506 = vmatprep.subr.bf16.mxu0 0
  %507 = vmatpush1.bf16.msra.mxu0 0
  %508 = vmatprep.subr.bf16.mxu0 0
  %509 = vmatpush1.bf16.msra.mxu0 0
  %510 = vmatprep.subr.bf16.mxu0 0
  %511 = vmatpush1.bf16.msra.mxu0 0
  %512 = vmatprep.subr.bf16.mxu0 0
  %513 = vmatpush1.bf16.msra.mxu0 0
  %514 = vmatprep.subr.bf16.mxu0 0
  %515 = vmatpush1.bf16.msra.mxu0 0
  %516 = vmatprep.subr.bf16.mxu0 0
  %517 = vmatpush1.bf16.msra.mxu0 0
  %518 = vmatprep.mubr.bf16.mxu0 0
  %519 = vmatmul.mubr.bf16.gmra.mrb[0].mxu0 %v478
  %v520 = vpop.f32.mrb[0].mxu0
  %v521 = vadd.f32 %v464, %v520
  %v522 = vpop.f32.mrb[0].mxu0
  %v523 = vpop.f32.mrb[0].mxu0
  %v524 = vadd.f32 %v464, %v523
  %v525 = vpop.f32.mrb[0].mxu0
  %526 = vmatprep.mubr.bf16.mxu0 0
  %527 = vmatmul.mubr.bf16.gmra.mrb[0].mxu0 %v481
  %v528 = vpop.f32.mrb[0].mxu0
  %v529 = vadd.f32 %v464, %v528
  %v530 = vpop.f32.mrb[0].mxu0
  %v531 = vpop.f32.mrb[0].mxu0
  %v532 = vpop.f32.mrb[0].mxu0
  %533 = vdwg.mxu0
  %v534 = vmax.f32 %v521, 0.0
  %v535 = vmax.f32 %v524, 0.0
  %v536 = vmax.f32 %v529, 0.0
  %s537 = scalar_lea.vmem %s8, 1
  %v538 = vld [vmem:[%s537] sm:$0x1]
  %s539 = scalar_lea.vmem %s9, 1
  %v540 = vld [vmem:[%s539] sm:$0x1]
  %v541 = vmul.f32 %v534, %v534
  %v542 = vmul.f32 %v535, %v535
  %v543 = vmul.f32 %v536, %v536
  %547 = vrot.lane.b32.xlu0 %v541, 30
  %v548 = vpop.permute.xlu0 %547
  %549 = vrot.lane.b32.xlu0 %v542, 30
  %v550 = vpop.permute.xlu0 %549
  %551 = vrot.lane.b32.xlu0 %v543, 30
  %v552 = vpop.permute.xlu0 %551
  %v556 = vsel %vm240, %v534, %v548
  %v557 = vsel %vm240, %v535, %v550
  %v558 = vsel %vm240, %v536, %v552
  %v559 = vsel %vm322, %v556, 0.0
  %v560 = vrot.slane %v559, 4
  %v561 = vadd.f32 %v559, %v560
  %v562 = vrot.slane %v561, 2
  %v563 = vadd.f32 %v561, %v562
  %v564 = vrot.slane %v563, 1
  %v565 = vadd.f32 %v563, %v564
  %v566 = vsel %vm322, %v557, 0.0
  %v567 = vrot.slane %v566, 4
  %v568 = vadd.f32 %v566, %v567
  %v569 = vrot.slane %v568, 2
  %v570 = vadd.f32 %v568, %v569
  %v571 = vrot.slane %v570, 1
  %v572 = vadd.f32 %v570, %v571
  %v573 = vsel %vm322, %v558, 0.0
  %v574 = vrot.slane %v573, 4
  %v575 = vadd.f32 %v573, %v574
  %v576 = vrot.slane %v575, 2
  %v577 = vadd.f32 %v575, %v576
  %v578 = vrot.slane %v577, 1
  %v579 = vadd.f32 %v577, %v578
  %v580 = vmul.f32 %v565, 0.125
  %v581 = vmul.f32 %v572, 0.125
  %v582 = vmul.f32 %v579, 0.125
  %v583 = vmul.f32 %v580, %v580
  %v584 = vmul.f32 %v581, %v581
  %v585 = vmul.f32 %v582, %v582
  %589 = vrot.lane.b32.xlu0 %v583, 30
  %v590 = vpop.permute.xlu0 %589
  %591 = vrot.lane.b32.xlu0 %v584, 30
  %v592 = vpop.permute.xlu0 %591
  %593 = vrot.lane.b32.xlu0 %v585, 30
  %v594 = vpop.permute.xlu0 %593
  %v598 = vsub.f32 %v580, %v590
  %v599 = vsub.f32 %v581, %v592
  %v600 = vsub.f32 %v582, %v594
  %v601 = vadd.f32 %v598, 1e-05
  %v602 = vadd.f32 %v599, 1e-05
  %v603 = vadd.f32 %v600, 1e-05
  %v604 = vrsqrt.pop %v601
  %v605 = vrsqrt.pop %v602
  %v606 = vrsqrt.pop %v603
  %v608 = vlaneseq
  %v609 = vshrl.u32 %v608, 7
  %v610 = vsub.s32 0, %v609
  %v611 = vrot.slane %v538, %v610
  %612 = vrot.lane.b32.xlu0 %v611, 30
  %v613 = vpop.permute.xlu0 %612
  %v615 = vmul.f32 %v604, %v613
  %v616 = vmul.f32 %v605, %v613
  %v617 = vmul.f32 %v606, %v613
  %621 = vrot.lane.b32.xlu0 %v615, 98
  %v622 = vpop.permute.xlu0 %621
  %623 = vrot.lane.b32.xlu0 %v616, 98
  %v624 = vpop.permute.xlu0 %623
  %625 = vrot.lane.b32.xlu0 %v617, 98
  %v626 = vpop.permute.xlu0 %625
  %v630 = vmul.f32 %v580, %v622
  %v631 = vmul.f32 %v581, %v624
  %v632 = vmul.f32 %v582, %v626
  %v633 = vsub.f32 %v540, %v630
  %v634 = vsub.f32 %v540, %v631
  %v635 = vsub.f32 %v540, %v632
  %v636 = vlaneseq
  %v637 = vshrl.u32 %v636, 7
  %v638 = vsub.s32 0, %v637
  %v639 = vrot.slane %v615, %v638
  %v640 = vlaneseq
  %v641 = vshrl.u32 %v640, 7
  %v642 = vsub.s32 0, %v641
  %v643 = vrot.slane %v616, %v642
  %v644 = vlaneseq
  %v645 = vshrl.u32 %v644, 7
  %v646 = vsub.s32 0, %v645
  %v647 = vrot.slane %v617, %v646
  %651 = vrot.lane.b32.xlu0 %v639, 98
  %v652 = vpop.permute.xlu0 %651
  %653 = vrot.lane.b32.xlu0 %v643, 98
  %v654 = vpop.permute.xlu0 %653
  %655 = vrot.lane.b32.xlu0 %v647, 98
  %v656 = vpop.permute.xlu0 %655
  %v660 = vmul.f32 %v534, %v652
  %v661 = vmul.f32 %v535, %v654
  %v662 = vmul.f32 %v536, %v656
  %v666 = vlaneseq
  %v667 = vshrl.u32 %v666, 7
  %v668 = vsub.s32 0, %v667
  %v669 = vrot.slane %v633, %v668
  %v670 = vlaneseq
  %v671 = vshrl.u32 %v670, 7
  %v672 = vsub.s32 0, %v671
  %v673 = vrot.slane %v634, %v672
  %v674 = vlaneseq
  %v675 = vshrl.u32 %v674, 7
  %v676 = vsub.s32 0, %v675
  %v677 = vrot.slane %v635, %v676
  %v681 = vadd.f32 %v660, %v669
  %v682 = vadd.f32 %v661, %v673
  %v683 = vadd.f32 %v662, %v677
  %v684 = vadd.f32 %v681, %v448
  %v685 = vadd.f32 %v682, %v449
  %v686 = vadd.f32 %v683, %v450
  %v687 = vpack.c.bf16 %v685, %v684
  %v688 = vpack.c.bf16 %v686, %v686
  %s689 = scalar_lea.vmem %s6, 32
  %v690 = vld [vmem:[%s689] sm:$0xf]
  %v691 = vld [vmem:[%s689 + $0x4] sm:$0xf]
  %v692 = vld [vmem:[%s689 + $0x8] sm:$0xf]
  %v693 = vld [vmem:[%s689 + $0xc] sm:$0x7]
  %s694 = scalar_lea.vmem %s7, 2
  %v695 = vld [vmem:[%s694] sm:$0x1]
  %v697 = vlaneseq
  %v698 = vshrl.u32 %v697, 7
  %v699 = vsub.s32 0, %v698
  %v700 = vrot.slane %v695, %v699
  %v706 = vunpack.c.l.b16 %v690
  %v707 = vunpack.c.l.b16 %v691
  %v708 = vunpack.c.l.b16 %v692
  %v709 = vunpack.c.l.b16 %v693
  %v710 = vpack.c.b16 %v707, %v706
  %v711 = vpack.c.b16 %v709, %v708
  %v714 = vsel %vm240, %v687, 0
  %v717 = vsel %vm240, %v688, 0
  %v720 = vsel %vm247, %v711, 0
  %722 = vmatprep.subr.bf16.mxu0 0
  %723 = vmatpush1.bf16.msra.mxu0 %v710
  %724 = vmatprep.subr.bf16.mxu0 0
  %725 = vmatpush1.bf16.msra.mxu0 %v720
  %726 = vmatprep.subr.bf16.mxu0 0
  %727 = vmatpush1.bf16.msra.mxu0 0
  %728 = vmatprep.subr.bf16.mxu0 0
  %729 = vmatpush1.bf16.msra.mxu0 0
  %730 = vmatprep.subr.bf16.mxu0 0
  %731 = vmatpush1.bf16.msra.mxu0 0
  %732 = vmatprep.subr.bf16.mxu0 0
  %733 = vmatpush1.bf16.msra.mxu0 0
  %734 = vmatprep.subr.bf16.mxu0 0
  %735 = vmatpush1.bf16.msra.mxu0 0
  %736 = vmatprep.subr.bf16.mxu0 0
  %737 = vmatpush1.bf16.msra.mxu0 0
  %738 = vmatprep.subr.bf16.mxu0 0
  %739 = vmatpush1.bf16.msra.mxu0 0
  %740 = vmatprep.subr.bf16.mxu0 0
  %741 = vmatpush1.bf16.msra.mxu0 0
  %742 = vmatprep.subr.bf16.mxu0 0
  %743 = vmatpush1.bf16.msra.mxu0 0
  %744 = vmatprep.subr.bf16.mxu0 0
  %745 = vmatpush1.bf16.msra.mxu0 0
  %746 = vmatprep.subr.bf16.mxu0 0
  %747 = vmatpush1.bf16.msra.mxu0 0
  %748 = vmatprep.subr.bf16.mxu0 0
  %749 = vmatpush1.bf16.msra.mxu0 0
  %750 = vmatprep.subr.bf16.mxu0 0
  %751 = vmatpush1.bf16.msra.mxu0 0
  %752 = vmatprep.subr.bf16.mxu0 0
  %753 = vmatpush1.bf16.msra.mxu0 0
  %754 = vmatprep.mubr.bf16.mxu0 0
  %755 = vmatmul.mubr.bf16.gmra.mrb[0].mxu0 %v714
  %v756 = vpop.f32.mrb[0].mxu0
  %v757 = vadd.f32 %v700, %v756
  %v758 = vpop.f32.mrb[0].mxu0
  %v759 = vpop.f32.mrb[0].mxu0
  %v760 = vadd.f32 %v700, %v759
  %v761 = vpop.f32.mrb[0].mxu0
  %762 = vmatprep.mubr.bf16.mxu0 0
  %763 = vmatmul.mubr.bf16.gmra.mrb[0].mxu0 %v717
  %v764 = vpop.f32.mrb[0].mxu0
  %v765 = vadd.f32 %v700, %v764
  %v766 = vpop.f32.mrb[0].mxu0
  %v767 = vpop.f32.mrb[0].mxu0
  %v768 = vpop.f32.mrb[0].mxu0
  %769 = vdwg.mxu0
  %v770 = vmax.f32 %v757, 0.0
  %v771 = vmax.f32 %v760, 0.0
  %v772 = vmax.f32 %v765, 0.0
  %s773 = scalar_lea.vmem %s8, 2
  %v774 = vld [vmem:[%s773] sm:$0x1]
  %s775 = scalar_lea.vmem %s9, 2
  %v776 = vld [vmem:[%s775] sm:$0x1]
  %v777 = vmul.f32 %v770, %v770
  %v778 = vmul.f32 %v771, %v771
  %v779 = vmul.f32 %v772, %v772
  %783 = vrot.lane.b32.xlu0 %v777, 30
  %v784 = vpop.permute.xlu0 %783
  %785 = vrot.lane.b32.xlu0 %v778, 30
  %v786 = vpop.permute.xlu0 %785
  %787 = vrot.lane.b32.xlu0 %v779, 30
  %v788 = vpop.permute.xlu0 %787
  %v792 = vsel %vm240, %v770, %v784
  %v793 = vsel %vm240, %v771, %v786
  %v794 = vsel %vm240, %v772, %v788
  %v795 = vsel %vm322, %v792, 0.0
  %v796 = vrot.slane %v795, 4
  %v797 = vadd.f32 %v795, %v796
  %v798 = vrot.slane %v797, 2
  %v799 = vadd.f32 %v797, %v798
  %v800 = vrot.slane %v799, 1
  %v801 = vadd.f32 %v799, %v800
  %v802 = vsel %vm322, %v793, 0.0
  %v803 = vrot.slane %v802, 4
  %v804 = vadd.f32 %v802, %v803
  %v805 = vrot.slane %v804, 2
  %v806 = vadd.f32 %v804, %v805
  %v807 = vrot.slane %v806, 1
  %v808 = vadd.f32 %v806, %v807
  %v809 = vsel %vm322, %v794, 0.0
  %v810 = vrot.slane %v809, 4
  %v811 = vadd.f32 %v809, %v810
  %v812 = vrot.slane %v811, 2
  %v813 = vadd.f32 %v811, %v812
  %v814 = vrot.slane %v813, 1
  %v815 = vadd.f32 %v813, %v814
  %v816 = vmul.f32 %v801, 0.125
  %v817 = vmul.f32 %v808, 0.125
  %v818 = vmul.f32 %v815, 0.125
  %v819 = vmul.f32 %v816, %v816
  %v820 = vmul.f32 %v817, %v817
  %v821 = vmul.f32 %v818, %v818
  %825 = vrot.lane.b32.xlu0 %v819, 30
  %v826 = vpop.permute.xlu0 %825
  %827 = vrot.lane.b32.xlu0 %v820, 30
  %v828 = vpop.permute.xlu0 %827
  %829 = vrot.lane.b32.xlu0 %v821, 30
  %v830 = vpop.permute.xlu0 %829
  %v834 = vsub.f32 %v816, %v826
  %v835 = vsub.f32 %v817, %v828
  %v836 = vsub.f32 %v818, %v830
  %v837 = vadd.f32 %v834, 1e-05
  %v838 = vadd.f32 %v835, 1e-05
  %v839 = vadd.f32 %v836, 1e-05
  %v840 = vrsqrt.pop %v837
  %v841 = vrsqrt.pop %v838
  %v842 = vrsqrt.pop %v839
  %v844 = vlaneseq
  %v845 = vshrl.u32 %v844, 7
  %v846 = vsub.s32 0, %v845
  %v847 = vrot.slane %v774, %v846
  %848 = vrot.lane.b32.xlu0 %v847, 30
  %v849 = vpop.permute.xlu0 %848
  %v851 = vmul.f32 %v840, %v849
  %v852 = vmul.f32 %v841, %v849
  %v853 = vmul.f32 %v842, %v849
  %857 = vrot.lane.b32.xlu0 %v851, 98
  %v858 = vpop.permute.xlu0 %857
  %859 = vrot.lane.b32.xlu0 %v852, 98
  %v860 = vpop.permute.xlu0 %859
  %861 = vrot.lane.b32.xlu0 %v853, 98
  %v862 = vpop.permute.xlu0 %861
  %v866 = vmul.f32 %v816, %v858
  %v867 = vmul.f32 %v817, %v860
  %v868 = vmul.f32 %v818, %v862
  %v869 = vsub.f32 %v776, %v866
  %v870 = vsub.f32 %v776, %v867
  %v871 = vsub.f32 %v776, %v868
  %v872 = vlaneseq
  %v873 = vshrl.u32 %v872, 7
  %v874 = vsub.s32 0, %v873
  %v875 = vrot.slane %v851, %v874
  %v876 = vlaneseq
  %v877 = vshrl.u32 %v876, 7
  %v878 = vsub.s32 0, %v877
  %v879 = vrot.slane %v852, %v878
  %v880 = vlaneseq
  %v881 = vshrl.u32 %v880, 7
  %v882 = vsub.s32 0, %v881
  %v883 = vrot.slane %v853, %v882
  %887 = vrot.lane.b32.xlu0 %v875, 98
  %v888 = vpop.permute.xlu0 %887
  %889 = vrot.lane.b32.xlu0 %v879, 98
  %v890 = vpop.permute.xlu0 %889
  %891 = vrot.lane.b32.xlu0 %v883, 98
  %v892 = vpop.permute.xlu0 %891
  %v896 = vmul.f32 %v770, %v888
  %v897 = vmul.f32 %v771, %v890
  %v898 = vmul.f32 %v772, %v892
  %v902 = vlaneseq
  %v903 = vshrl.u32 %v902, 7
  %v904 = vsub.s32 0, %v903
  %v905 = vrot.slane %v869, %v904
  %v906 = vlaneseq
  %v907 = vshrl.u32 %v906, 7
  %v908 = vsub.s32 0, %v907
  %v909 = vrot.slane %v870, %v908
  %v910 = vlaneseq
  %v911 = vshrl.u32 %v910, 7
  %v912 = vsub.s32 0, %v911
  %v913 = vrot.slane %v871, %v912
  %v917 = vadd.f32 %v896, %v905
  %v918 = vadd.f32 %v897, %v909
  %v919 = vadd.f32 %v898, %v913
  %v920 = vadd.f32 %v917, %v684
  %v921 = vadd.f32 %v918, %v685
  %v922 = vadd.f32 %v919, %v686
  %v923 = vpack.c.bf16 %v921, %v920
  %v924 = vpack.c.bf16 %v922, %v922
  %s925 = scalar_lea.vmem %s6, 48
  %v926 = vld [vmem:[%s925] sm:$0xf]
  %v927 = vld [vmem:[%s925 + $0x4] sm:$0xf]
  %v928 = vld [vmem:[%s925 + $0x8] sm:$0xf]
  %v929 = vld [vmem:[%s925 + $0xc] sm:$0x7]
  %s930 = scalar_lea.vmem %s7, 3
  %v931 = vld [vmem:[%s930] sm:$0x1]
  %v933 = vlaneseq
  %v934 = vshrl.u32 %v933, 7
  %v935 = vsub.s32 0, %v934
  %v936 = vrot.slane %v931, %v935
  %v942 = vunpack.c.l.b16 %v926
  %v943 = vunpack.c.l.b16 %v927
  %v944 = vunpack.c.l.b16 %v928
  %v945 = vunpack.c.l.b16 %v929
  %v946 = vpack.c.b16 %v943, %v942
  %v947 = vpack.c.b16 %v945, %v944
  %v950 = vsel %vm240, %v923, 0
  %v953 = vsel %vm240, %v924, 0
  %v956 = vsel %vm247, %v947, 0
  %958 = vmatprep.subr.bf16.mxu0 0
  %959 = vmatpush1.bf16.msra.mxu0 %v946
  %960 = vmatprep.subr.bf16.mxu0 0
  %961 = vmatpush1.bf16.msra.mxu0 %v956
  %962 = vmatprep.subr.bf16.mxu0 0
  %963 = vmatpush1.bf16.msra.mxu0 0
  %964 = vmatprep.subr.bf16.mxu0 0
  %965 = vmatpush1.bf16.msra.mxu0 0
  %966 = vmatprep.subr.bf16.mxu0 0
  %967 = vmatpush1.bf16.msra.mxu0 0
  %968 = vmatprep.subr.bf16.mxu0 0
  %969 = vmatpush1.bf16.msra.mxu0 0
  %970 = vmatprep.subr.bf16.mxu0 0
  %971 = vmatpush1.bf16.msra.mxu0 0
  %972 = vmatprep.subr.bf16.mxu0 0
  %973 = vmatpush1.bf16.msra.mxu0 0
  %974 = vmatprep.subr.bf16.mxu0 0
  %975 = vmatpush1.bf16.msra.mxu0 0
  %976 = vmatprep.subr.bf16.mxu0 0
  %977 = vmatpush1.bf16.msra.mxu0 0
  %978 = vmatprep.subr.bf16.mxu0 0
  %979 = vmatpush1.bf16.msra.mxu0 0
  %980 = vmatprep.subr.bf16.mxu0 0
  %981 = vmatpush1.bf16.msra.mxu0 0
  %982 = vmatprep.subr.bf16.mxu0 0
  %983 = vmatpush1.bf16.msra.mxu0 0
  %984 = vmatprep.subr.bf16.mxu0 0
  %985 = vmatpush1.bf16.msra.mxu0 0
  %986 = vmatprep.subr.bf16.mxu0 0
  %987 = vmatpush1.bf16.msra.mxu0 0
  %988 = vmatprep.subr.bf16.mxu0 0
  %989 = vmatpush1.bf16.msra.mxu0 0
  %990 = vmatprep.mubr.bf16.mxu0 0
  %991 = vmatmul.mubr.bf16.gmra.mrb[0].mxu0 %v950
  %v992 = vpop.f32.mrb[0].mxu0
  %v993 = vadd.f32 %v936, %v992
  %v994 = vpop.f32.mrb[0].mxu0
  %v995 = vpop.f32.mrb[0].mxu0
  %v996 = vadd.f32 %v936, %v995
  %v997 = vpop.f32.mrb[0].mxu0
  %998 = vmatprep.mubr.bf16.mxu0 0
  %999 = vmatmul.mubr.bf16.gmra.mrb[0].mxu0 %v953
  %v1000 = vpop.f32.mrb[0].mxu0
  %v1001 = vadd.f32 %v936, %v1000
  %v1002 = vpop.f32.mrb[0].mxu0
  %v1003 = vpop.f32.mrb[0].mxu0
  %v1004 = vpop.f32.mrb[0].mxu0
  %1005 = vdwg.mxu0
  %v1006 = vmax.f32 %v993, 0.0
  %v1007 = vmax.f32 %v996, 0.0
  %v1008 = vmax.f32 %v1001, 0.0
  %s1009 = scalar_lea.vmem %s8, 3
  %v1010 = vld [vmem:[%s1009] sm:$0x1]
  %s1011 = scalar_lea.vmem %s9, 3
  %v1012 = vld [vmem:[%s1011] sm:$0x1]
  %v1013 = vmul.f32 %v1006, %v1006
  %v1014 = vmul.f32 %v1007, %v1007
  %v1015 = vmul.f32 %v1008, %v1008
  %1019 = vrot.lane.b32.xlu0 %v1013, 30
  %v1020 = vpop.permute.xlu0 %1019
  %1021 = vrot.lane.b32.xlu0 %v1014, 30
  %v1022 = vpop.permute.xlu0 %1021
  %1023 = vrot.lane.b32.xlu0 %v1015, 30
  %v1024 = vpop.permute.xlu0 %1023
  %v1028 = vsel %vm240, %v1006, %v1020
  %v1029 = vsel %vm240, %v1007, %v1022
  %v1030 = vsel %vm240, %v1008, %v1024
  %v1031 = vsel %vm322, %v1028, 0.0
  %v1032 = vrot.slane %v1031, 4
  %v1033 = vadd.f32 %v1031, %v1032
  %v1034 = vrot.slane %v1033, 2
  %v1035 = vadd.f32 %v1033, %v1034
  %v1036 = vrot.slane %v1035, 1
  %v1037 = vadd.f32 %v1035, %v1036
  %v1038 = vsel %vm322, %v1029, 0.0
  %v1039 = vrot.slane %v1038, 4
  %v1040 = vadd.f32 %v1038, %v1039
  %v1041 = vrot.slane %v1040, 2
  %v1042 = vadd.f32 %v1040, %v1041
  %v1043 = vrot.slane %v1042, 1
  %v1044 = vadd.f32 %v1042, %v1043
  %v1045 = vsel %vm322, %v1030, 0.0
  %v1046 = vrot.slane %v1045, 4
  %v1047 = vadd.f32 %v1045, %v1046
  %v1048 = vrot.slane %v1047, 2
  %v1049 = vadd.f32 %v1047, %v1048
  %v1050 = vrot.slane %v1049, 1
  %v1051 = vadd.f32 %v1049, %v1050
  %v1052 = vmul.f32 %v1037, 0.125
  %v1053 = vmul.f32 %v1044, 0.125
  %v1054 = vmul.f32 %v1051, 0.125
  %v1055 = vmul.f32 %v1052, %v1052
  %v1056 = vmul.f32 %v1053, %v1053
  %v1057 = vmul.f32 %v1054, %v1054
  %1061 = vrot.lane.b32.xlu0 %v1055, 30
  %v1062 = vpop.permute.xlu0 %1061
  %1063 = vrot.lane.b32.xlu0 %v1056, 30
  %v1064 = vpop.permute.xlu0 %1063
  %1065 = vrot.lane.b32.xlu0 %v1057, 30
  %v1066 = vpop.permute.xlu0 %1065
  %v1070 = vsub.f32 %v1052, %v1062
  %v1071 = vsub.f32 %v1053, %v1064
  %v1072 = vsub.f32 %v1054, %v1066
  %v1073 = vadd.f32 %v1070, 1e-05
  %v1074 = vadd.f32 %v1071, 1e-05
  %v1075 = vadd.f32 %v1072, 1e-05
  %v1076 = vrsqrt.pop %v1073
  %v1077 = vrsqrt.pop %v1074
  %v1078 = vrsqrt.pop %v1075
  %v1080 = vlaneseq
  %v1081 = vshrl.u32 %v1080, 7
  %v1082 = vsub.s32 0, %v1081
  %v1083 = vrot.slane %v1010, %v1082
  %1084 = vrot.lane.b32.xlu0 %v1083, 30
  %v1085 = vpop.permute.xlu0 %1084
  %v1087 = vmul.f32 %v1076, %v1085
  %v1088 = vmul.f32 %v1077, %v1085
  %v1089 = vmul.f32 %v1078, %v1085
  %1093 = vrot.lane.b32.xlu0 %v1087, 98
  %v1094 = vpop.permute.xlu0 %1093
  %1095 = vrot.lane.b32.xlu0 %v1088, 98
  %v1096 = vpop.permute.xlu0 %1095
  %1097 = vrot.lane.b32.xlu0 %v1089, 98
  %v1098 = vpop.permute.xlu0 %1097
  %v1102 = vmul.f32 %v1052, %v1094
  %v1103 = vmul.f32 %v1053, %v1096
  %v1104 = vmul.f32 %v1054, %v1098
  %v1105 = vsub.f32 %v1012, %v1102
  %v1106 = vsub.f32 %v1012, %v1103
  %v1107 = vsub.f32 %v1012, %v1104
  %v1108 = vlaneseq
  %v1109 = vshrl.u32 %v1108, 7
  %v1110 = vsub.s32 0, %v1109
  %v1111 = vrot.slane %v1087, %v1110
  %v1112 = vlaneseq
  %v1113 = vshrl.u32 %v1112, 7
  %v1114 = vsub.s32 0, %v1113
  %v1115 = vrot.slane %v1088, %v1114
  %v1116 = vlaneseq
  %v1117 = vshrl.u32 %v1116, 7
  %v1118 = vsub.s32 0, %v1117
  %v1119 = vrot.slane %v1089, %v1118
  %1123 = vrot.lane.b32.xlu0 %v1111, 98
  %v1124 = vpop.permute.xlu0 %1123
  %1125 = vrot.lane.b32.xlu0 %v1115, 98
  %v1126 = vpop.permute.xlu0 %1125
  %1127 = vrot.lane.b32.xlu0 %v1119, 98
  %v1128 = vpop.permute.xlu0 %1127
  %v1132 = vmul.f32 %v1006, %v1124
  %v1133 = vmul.f32 %v1007, %v1126
  %v1134 = vmul.f32 %v1008, %v1128
  %v1138 = vlaneseq
  %v1139 = vshrl.u32 %v1138, 7
  %v1140 = vsub.s32 0, %v1139
  %v1141 = vrot.slane %v1105, %v1140
  %v1142 = vlaneseq
  %v1143 = vshrl.u32 %v1142, 7
  %v1144 = vsub.s32 0, %v1143
  %v1145 = vrot.slane %v1106, %v1144
  %v1146 = vlaneseq
  %v1147 = vshrl.u32 %v1146, 7
  %v1148 = vsub.s32 0, %v1147
  %v1149 = vrot.slane %v1107, %v1148
  %v1153 = vadd.f32 %v1132, %v1141
  %v1154 = vadd.f32 %v1133, %v1145
  %v1155 = vadd.f32 %v1134, %v1149
  %v1156 = vadd.f32 %v1153, %v920
  %v1157 = vadd.f32 %v1154, %v921
  %v1158 = vadd.f32 %v1155, %v922
  %v1159 = vpack.c.bf16 %v1157, %v1156
  %v1160 = vpack.c.bf16 %v1158, %v1158
  %s1161 = scalar_lea.vmem %s6, 64
  %v1162 = vld [vmem:[%s1161] sm:$0xf]
  %v1163 = vld [vmem:[%s1161 + $0x4] sm:$0xf]
  %v1164 = vld [vmem:[%s1161 + $0x8] sm:$0xf]
  %v1165 = vld [vmem:[%s1161 + $0xc] sm:$0x7]
  %s1166 = scalar_lea.vmem %s7, 4
  %v1167 = vld [vmem:[%s1166] sm:$0x1]
  %v1169 = vlaneseq
  %v1170 = vshrl.u32 %v1169, 7
  %v1171 = vsub.s32 0, %v1170
  %v1172 = vrot.slane %v1167, %v1171
  %v1178 = vunpack.c.l.b16 %v1162
  %v1179 = vunpack.c.l.b16 %v1163
  %v1180 = vunpack.c.l.b16 %v1164
  %v1181 = vunpack.c.l.b16 %v1165
  %v1182 = vpack.c.b16 %v1179, %v1178
  %v1183 = vpack.c.b16 %v1181, %v1180
  %v1186 = vsel %vm240, %v1159, 0
  %v1189 = vsel %vm240, %v1160, 0
  %v1192 = vsel %vm247, %v1183, 0
  %1194 = vmatprep.subr.bf16.mxu0 0
  %1195 = vmatpush1.bf16.msra.mxu0 %v1182
  %1196 = vmatprep.subr.bf16.mxu0 0
  %1197 = vmatpush1.bf16.msra.mxu0 %v1192
  %1198 = vmatprep.subr.bf16.mxu0 0
  %1199 = vmatpush1.bf16.msra.mxu0 0
  %1200 = vmatprep.subr.bf16.mxu0 0
  %1201 = vmatpush1.bf16.msra.mxu0 0
  %1202 = vmatprep.subr.bf16.mxu0 0
  %1203 = vmatpush1.bf16.msra.mxu0 0
  %1204 = vmatprep.subr.bf16.mxu0 0
  %1205 = vmatpush1.bf16.msra.mxu0 0
  %1206 = vmatprep.subr.bf16.mxu0 0
  %1207 = vmatpush1.bf16.msra.mxu0 0
  %1208 = vmatprep.subr.bf16.mxu0 0
  %1209 = vmatpush1.bf16.msra.mxu0 0
  %1210 = vmatprep.subr.bf16.mxu0 0
  %1211 = vmatpush1.bf16.msra.mxu0 0
  %1212 = vmatprep.subr.bf16.mxu0 0
  %1213 = vmatpush1.bf16.msra.mxu0 0
  %1214 = vmatprep.subr.bf16.mxu0 0
  %1215 = vmatpush1.bf16.msra.mxu0 0
  %1216 = vmatprep.subr.bf16.mxu0 0
  %1217 = vmatpush1.bf16.msra.mxu0 0
  %1218 = vmatprep.subr.bf16.mxu0 0
  %1219 = vmatpush1.bf16.msra.mxu0 0
  %1220 = vmatprep.subr.bf16.mxu0 0
  %1221 = vmatpush1.bf16.msra.mxu0 0
  %1222 = vmatprep.subr.bf16.mxu0 0
  %1223 = vmatpush1.bf16.msra.mxu0 0
  %1224 = vmatprep.subr.bf16.mxu0 0
  %1225 = vmatpush1.bf16.msra.mxu0 0
  %1226 = vmatprep.mubr.bf16.mxu0 0
  %1227 = vmatmul.mubr.bf16.gmra.mrb[0].mxu0 %v1186
  %v1228 = vpop.f32.mrb[0].mxu0
  %v1229 = vadd.f32 %v1172, %v1228
  %v1230 = vpop.f32.mrb[0].mxu0
  %v1231 = vpop.f32.mrb[0].mxu0
  %v1232 = vadd.f32 %v1172, %v1231
  %v1233 = vpop.f32.mrb[0].mxu0
  %1234 = vmatprep.mubr.bf16.mxu0 0
  %1235 = vmatmul.mubr.bf16.gmra.mrb[0].mxu0 %v1189
  %v1236 = vpop.f32.mrb[0].mxu0
  %v1237 = vadd.f32 %v1172, %v1236
  %v1238 = vpop.f32.mrb[0].mxu0
  %v1239 = vpop.f32.mrb[0].mxu0
  %v1240 = vpop.f32.mrb[0].mxu0
  %1241 = vdwg.mxu0
  %v1242 = vmax.f32 %v1229, 0.0
  %v1243 = vmax.f32 %v1232, 0.0
  %v1244 = vmax.f32 %v1237, 0.0
  %s1245 = scalar_lea.vmem %s8, 4
  %v1246 = vld [vmem:[%s1245] sm:$0x1]
  %s1247 = scalar_lea.vmem %s9, 4
  %v1248 = vld [vmem:[%s1247] sm:$0x1]
  %v1249 = vmul.f32 %v1242, %v1242
  %v1250 = vmul.f32 %v1243, %v1243
  %v1251 = vmul.f32 %v1244, %v1244
  %1255 = vrot.lane.b32.xlu0 %v1249, 30
  %v1256 = vpop.permute.xlu0 %1255
  %1257 = vrot.lane.b32.xlu0 %v1250, 30
  %v1258 = vpop.permute.xlu0 %1257
  %1259 = vrot.lane.b32.xlu0 %v1251, 30
  %v1260 = vpop.permute.xlu0 %1259
  %v1264 = vsel %vm240, %v1242, %v1256
  %v1265 = vsel %vm240, %v1243, %v1258
  %v1266 = vsel %vm240, %v1244, %v1260
  %v1267 = vsel %vm322, %v1264, 0.0
  %v1268 = vrot.slane %v1267, 4
  %v1269 = vadd.f32 %v1267, %v1268
  %v1270 = vrot.slane %v1269, 2
  %v1271 = vadd.f32 %v1269, %v1270
  %v1272 = vrot.slane %v1271, 1
  %v1273 = vadd.f32 %v1271, %v1272
  %v1274 = vsel %vm322, %v1265, 0.0
  %v1275 = vrot.slane %v1274, 4
  %v1276 = vadd.f32 %v1274, %v1275
  %v1277 = vrot.slane %v1276, 2
  %v1278 = vadd.f32 %v1276, %v1277
  %v1279 = vrot.slane %v1278, 1
  %v1280 = vadd.f32 %v1278, %v1279
  %v1281 = vsel %vm322, %v1266, 0.0
  %v1282 = vrot.slane %v1281, 4
  %v1283 = vadd.f32 %v1281, %v1282
  %v1284 = vrot.slane %v1283, 2
  %v1285 = vadd.f32 %v1283, %v1284
  %v1286 = vrot.slane %v1285, 1
  %v1287 = vadd.f32 %v1285, %v1286
  %v1288 = vmul.f32 %v1273, 0.125
  %v1289 = vmul.f32 %v1280, 0.125
  %v1290 = vmul.f32 %v1287, 0.125
  %v1291 = vmul.f32 %v1288, %v1288
  %v1292 = vmul.f32 %v1289, %v1289
  %v1293 = vmul.f32 %v1290, %v1290
  %1297 = vrot.lane.b32.xlu0 %v1291, 30
  %v1298 = vpop.permute.xlu0 %1297
  %1299 = vrot.lane.b32.xlu0 %v1292, 30
  %v1300 = vpop.permute.xlu0 %1299
  %1301 = vrot.lane.b32.xlu0 %v1293, 30
  %v1302 = vpop.permute.xlu0 %1301
  %v1306 = vsub.f32 %v1288, %v1298
  %v1307 = vsub.f32 %v1289, %v1300
  %v1308 = vsub.f32 %v1290, %v1302
  %v1309 = vadd.f32 %v1306, 1e-05
  %v1310 = vadd.f32 %v1307, 1e-05
  %v1311 = vadd.f32 %v1308, 1e-05
  %v1312 = vrsqrt.pop %v1309
  %v1313 = vrsqrt.pop %v1310
  %v1314 = vrsqrt.pop %v1311
  %v1316 = vlaneseq
  %v1317 = vshrl.u32 %v1316, 7
  %v1318 = vsub.s32 0, %v1317
  %v1319 = vrot.slane %v1246, %v1318
  %1320 = vrot.lane.b32.xlu0 %v1319, 30
  %v1321 = vpop.permute.xlu0 %1320
  %v1323 = vmul.f32 %v1312, %v1321
  %v1324 = vmul.f32 %v1313, %v1321
  %v1325 = vmul.f32 %v1314, %v1321
  %1329 = vrot.lane.b32.xlu0 %v1323, 98
  %v1330 = vpop.permute.xlu0 %1329
  %1331 = vrot.lane.b32.xlu0 %v1324, 98
  %v1332 = vpop.permute.xlu0 %1331
  %1333 = vrot.lane.b32.xlu0 %v1325, 98
  %v1334 = vpop.permute.xlu0 %1333
  %v1338 = vmul.f32 %v1288, %v1330
  %v1339 = vmul.f32 %v1289, %v1332
  %v1340 = vmul.f32 %v1290, %v1334
  %v1341 = vsub.f32 %v1248, %v1338
  %v1342 = vsub.f32 %v1248, %v1339
  %v1343 = vsub.f32 %v1248, %v1340
  %v1344 = vlaneseq
  %v1345 = vshrl.u32 %v1344, 7
  %v1346 = vsub.s32 0, %v1345
  %v1347 = vrot.slane %v1323, %v1346
  %v1348 = vlaneseq
  %v1349 = vshrl.u32 %v1348, 7
  %v1350 = vsub.s32 0, %v1349
  %v1351 = vrot.slane %v1324, %v1350
  %v1352 = vlaneseq
  %v1353 = vshrl.u32 %v1352, 7
  %v1354 = vsub.s32 0, %v1353
  %v1355 = vrot.slane %v1325, %v1354
  %1359 = vrot.lane.b32.xlu0 %v1347, 98
  %v1360 = vpop.permute.xlu0 %1359
  %1361 = vrot.lane.b32.xlu0 %v1351, 98
  %v1362 = vpop.permute.xlu0 %1361
  %1363 = vrot.lane.b32.xlu0 %v1355, 98
  %v1364 = vpop.permute.xlu0 %1363
  %v1368 = vmul.f32 %v1242, %v1360
  %v1369 = vmul.f32 %v1243, %v1362
  %v1370 = vmul.f32 %v1244, %v1364
  %v1374 = vlaneseq
  %v1375 = vshrl.u32 %v1374, 7
  %v1376 = vsub.s32 0, %v1375
  %v1377 = vrot.slane %v1341, %v1376
  %v1378 = vlaneseq
  %v1379 = vshrl.u32 %v1378, 7
  %v1380 = vsub.s32 0, %v1379
  %v1381 = vrot.slane %v1342, %v1380
  %v1382 = vlaneseq
  %v1383 = vshrl.u32 %v1382, 7
  %v1384 = vsub.s32 0, %v1383
  %v1385 = vrot.slane %v1343, %v1384
  %v1389 = vadd.f32 %v1368, %v1377
  %v1390 = vadd.f32 %v1369, %v1381
  %v1391 = vadd.f32 %v1370, %v1385
  %v1392 = vadd.f32 %v1389, %v1156
  %v1393 = vadd.f32 %v1390, %v1157
  %v1394 = vadd.f32 %v1391, %v1158
  %v1395 = vpack.c.bf16 %v1393, %v1392
  %v1396 = vpack.c.bf16 %v1394, %v1394
  %v1397 = vld [vmem:[%s10] sm:$0xf]
  %v1398 = vld [vmem:[%s10 + $0x4] sm:$0xf]
  %v1399 = vld [vmem:[%s10 + $0x8] sm:$0xf]
  %v1400 = vld [vmem:[%s10 + $0xc] sm:$0x7]
  %v1401 = vld [vmem:[%s11] sm:$0x1]
  %v1403 = vlaneseq
  %v1404 = vshrl.u32 %v1403, 7
  %v1405 = vsub.s32 0, %v1404
  %v1406 = vrot.slane %v1401, %v1405
  %v1412 = vunpack.c.l.b16 %v1397
  %v1413 = vunpack.c.l.b16 %v1398
  %v1414 = vunpack.c.l.b16 %v1399
  %v1415 = vunpack.c.l.b16 %v1400
  %v1416 = vpack.c.b16 %v1413, %v1412
  %v1417 = vpack.c.b16 %v1415, %v1414
  %v1420 = vsel %vm240, %v1395, 0
  %v1423 = vsel %vm240, %v1396, 0
  %v1426 = vsel %vm247, %v1417, 0
  %1428 = vmatprep.subr.bf16.mxu0 0
  %1429 = vmatpush1.bf16.msra.mxu0 %v1416
  %1430 = vmatprep.subr.bf16.mxu0 0
  %1431 = vmatpush1.bf16.msra.mxu0 %v1426
  %1432 = vmatprep.subr.bf16.mxu0 0
  %1433 = vmatpush1.bf16.msra.mxu0 0
  %1434 = vmatprep.subr.bf16.mxu0 0
  %1435 = vmatpush1.bf16.msra.mxu0 0
  %1436 = vmatprep.subr.bf16.mxu0 0
  %1437 = vmatpush1.bf16.msra.mxu0 0
  %1438 = vmatprep.subr.bf16.mxu0 0
  %1439 = vmatpush1.bf16.msra.mxu0 0
  %1440 = vmatprep.subr.bf16.mxu0 0
  %1441 = vmatpush1.bf16.msra.mxu0 0
  %1442 = vmatprep.subr.bf16.mxu0 0
  %1443 = vmatpush1.bf16.msra.mxu0 0
  %1444 = vmatprep.subr.bf16.mxu0 0
  %1445 = vmatpush1.bf16.msra.mxu0 0
  %1446 = vmatprep.subr.bf16.mxu0 0
  %1447 = vmatpush1.bf16.msra.mxu0 0
  %1448 = vmatprep.subr.bf16.mxu0 0
  %1449 = vmatpush1.bf16.msra.mxu0 0
  %1450 = vmatprep.subr.bf16.mxu0 0
  %1451 = vmatpush1.bf16.msra.mxu0 0
  %1452 = vmatprep.subr.bf16.mxu0 0
  %1453 = vmatpush1.bf16.msra.mxu0 0
  %1454 = vmatprep.subr.bf16.mxu0 0
  %1455 = vmatpush1.bf16.msra.mxu0 0
  %1456 = vmatprep.subr.bf16.mxu0 0
  %1457 = vmatpush1.bf16.msra.mxu0 0
  %1458 = vmatprep.subr.bf16.mxu0 0
  %1459 = vmatpush1.bf16.msra.mxu0 0
  %1460 = vmatprep.mubr.bf16.mxu0 0
  %1461 = vmatmul.mubr.bf16.gmra.mrb[0].mxu0 %v1420
  %v1462 = vpop.f32.mrb[0].mxu0
  %v1463 = vadd.f32 %v1406, %v1462
  %v1464 = vpop.f32.mrb[0].mxu0
  %v1465 = vpop.f32.mrb[0].mxu0
  %v1466 = vadd.f32 %v1406, %v1465
  %v1467 = vpop.f32.mrb[0].mxu0
  %1468 = vmatprep.mubr.bf16.mxu0 0
  %1469 = vmatmul.mubr.bf16.gmra.mrb[0].mxu0 %v1423
  %v1470 = vpop.f32.mrb[0].mxu0
  %v1471 = vadd.f32 %v1406, %v1470
  %v1472 = vpop.f32.mrb[0].mxu0
  %v1473 = vpop.f32.mrb[0].mxu0
  %v1474 = vpop.f32.mrb[0].mxu0
  %1475 = vdwg.mxu0
  %vm1476 = vcmask 285696
  %v1477 = vsel %vm1476, %v1463, 0.0
  %v1478 = vsel %vm1476, %v1466, 0.0
  %v1479 = vadd.f32 %v1477, %v1478
  %v1480 = vsel %vm1476, %v1471, 0.0
  %v1481 = vadd.f32 %v1479, %v1480
  %v1483 = vand.u32 %v154, %v110
  %1485 = vmatprep.subr.bf16.mxu0 0
  %1486 = vmatpush1.bf16.msra.mxu0 %v1483
  %1487 = vmatprep.subr.bf16.mxu0 0
  %1488 = vmatpush1.bf16.msra.mxu0 0
  %1489 = vmatprep.subr.bf16.mxu0 0
  %1490 = vmatpush1.bf16.msra.mxu0 0
  %1491 = vmatprep.subr.bf16.mxu0 0
  %1492 = vmatpush1.bf16.msra.mxu0 0
  %1493 = vmatprep.subr.bf16.mxu0 0
  %1494 = vmatpush1.bf16.msra.mxu0 0
  %1495 = vmatprep.subr.bf16.mxu0 0
  %1496 = vmatpush1.bf16.msra.mxu0 0
  %1497 = vmatprep.subr.bf16.mxu0 0
  %1498 = vmatpush1.bf16.msra.mxu0 0
  %1499 = vmatprep.subr.bf16.mxu0 0
  %1500 = vmatpush1.bf16.msra.mxu0 0
  %1501 = vmatprep.subr.bf16.mxu0 0
  %1502 = vmatpush1.bf16.msra.mxu0 0
  %1503 = vmatprep.subr.bf16.mxu0 0
  %1504 = vmatpush1.bf16.msra.mxu0 0
  %1505 = vmatprep.subr.bf16.mxu0 0
  %1506 = vmatpush1.bf16.msra.mxu0 0
  %1507 = vmatprep.subr.bf16.mxu0 0
  %1508 = vmatpush1.bf16.msra.mxu0 0
  %1509 = vmatprep.subr.bf16.mxu0 0
  %1510 = vmatpush1.bf16.msra.mxu0 0
  %1511 = vmatprep.subr.bf16.mxu0 0
  %1512 = vmatpush1.bf16.msra.mxu0 0
  %1513 = vmatprep.subr.bf16.mxu0 0
  %1514 = vmatpush1.bf16.msra.mxu0 0
  %1515 = vmatprep.subr.bf16.mxu0 0
  %1516 = vmatpush1.bf16.msra.mxu0 0
  %1517 = vmatprep.mubr.bf16.mxu0 0
  %1518 = vmatmul.mubr.bf16.gmra.mrb[0].mxu0 %v105
  %v1519 = vpop.f32.mrb[0].mxu0
  %v1520 = vadd.f32 %v1481, %v1519
  %v1521 = vpop.f32.mrb[0].mxu0
  %v1522 = vpop.f32.mrb[0].mxu0
  %v1523 = vpop.f32.mrb[0].mxu0
  %1524 = vdwg.mxu0
  %v1525 = vpack.c.bf16 %v1520, %v1520
  %v1526 = vld [vmem:[%s12] sm:$0xf]
  %v1527 = vld [vmem:[%s12 + $0x4] sm:$0xf]
  %v1528 = vld [vmem:[%s12 + $0x8] sm:$0xf]
  %v1529 = vld [vmem:[%s12 + $0xc] sm:$0xf]
  %v1530 = vld [vmem:[%s12 + $0x10] sm:$0x3]
  %v1531 = vld [vmem:[%s13] sm:$0x1]
  %v1533 = vlaneseq
  %v1534 = vshrl.u32 %v1533, 7
  %v1535 = vsub.s32 0, %v1534
  %v1536 = vrot.slane %v1531, %v1535
  %v1543 = vunpack.c.l.b16 %v1526
  %v1544 = vunpack.c.l.b16 %v1527
  %v1545 = vunpack.c.l.b16 %v1528
  %v1546 = vunpack.c.l.b16 %v1529
  %v1547 = vunpack.c.l.b16 %v1530
  %v1548 = vpack.c.b16 %v1544, %v1543
  %v1549 = vpack.c.b16 %v1546, %v1545
  %v1550 = vpack.c.b16 %v1547, %v1547
  %v1554 = vsel %vm1476, %v1525, 0
  %vm1556 = vcmask 1040384
  %vm1557 = vcmask 1041408
  %v1558 = vsel %vm1556, 4294967295, 65535
  %v1559 = vsel %vm1557, %v1558, 0
  %v1561 = vand.u32 %v1550, %v1559
  %1563 = vmatprep.subr.bf16.mxu0 0
  %1564 = vmatpush1.bf16.msra.mxu0 %v1548
  %1565 = vmatprep.subr.bf16.mxu0 0
  %1566 = vmatpush1.bf16.msra.mxu0 %v1549
  %1567 = vmatprep.subr.bf16.mxu0 0
  %1568 = vmatpush1.bf16.msra.mxu0 %v1561
  %1569 = vmatprep.subr.bf16.mxu0 0
  %1570 = vmatpush1.bf16.msra.mxu0 0
  %1571 = vmatprep.subr.bf16.mxu0 0
  %1572 = vmatpush1.bf16.msra.mxu0 0
  %1573 = vmatprep.subr.bf16.mxu0 0
  %1574 = vmatpush1.bf16.msra.mxu0 0
  %1575 = vmatprep.subr.bf16.mxu0 0
  %1576 = vmatpush1.bf16.msra.mxu0 0
  %1577 = vmatprep.subr.bf16.mxu0 0
  %1578 = vmatpush1.bf16.msra.mxu0 0
  %1579 = vmatprep.subr.bf16.mxu0 0
  %1580 = vmatpush1.bf16.msra.mxu0 0
  %1581 = vmatprep.subr.bf16.mxu0 0
  %1582 = vmatpush1.bf16.msra.mxu0 0
  %1583 = vmatprep.subr.bf16.mxu0 0
  %1584 = vmatpush1.bf16.msra.mxu0 0
  %1585 = vmatprep.subr.bf16.mxu0 0
  %1586 = vmatpush1.bf16.msra.mxu0 0
  %1587 = vmatprep.subr.bf16.mxu0 0
  %1588 = vmatpush1.bf16.msra.mxu0 0
  %1589 = vmatprep.subr.bf16.mxu0 0
  %1590 = vmatpush1.bf16.msra.mxu0 0
  %1591 = vmatprep.subr.bf16.mxu0 0
  %1592 = vmatpush1.bf16.msra.mxu0 0
  %1593 = vmatprep.subr.bf16.mxu0 0
  %1594 = vmatpush1.bf16.msra.mxu0 0
  %1595 = vmatprep.mubr.bf16.mxu0 0
  %1596 = vmatmul.mubr.bf16.gmra.mrb[0].mxu0 %v1554
  %v1597 = vpop.f32.mrb[0].mxu0
  %v1598 = vadd.f32 %v1536, %v1597
  %v1599 = vpop.f32.mrb[0].mxu0
  %v1600 = vpop.f32.mrb[0].mxu0
  %v1601 = vpop.f32.mrb[0].mxu0
  %1602 = vdwg.mxu0
  %v1603 = vmax.f32 %v1598, 0.0
  %v1604 = vld [vmem:[%s14] sm:$0x1]
  %v1605 = vld [vmem:[%s15] sm:$0x1]
  %v1606 = vmul.f32 %v1603, %v1603
  %1608 = vrot.lane.b32.xlu0 %v1606, 35
  %v1609 = vpop.permute.xlu0 %1608
  %v1611 = vsel %vm1476, %v1603, %v1609
  %vm1612 = vcmask 572416
  %v1613 = vsel %vm1612, %v1611, 0.0
  %v1614 = vrot.slane %v1613, 4
  %v1615 = vadd.f32 %v1613, %v1614
  %v1616 = vrot.slane %v1615, 2
  %v1617 = vadd.f32 %v1615, %v1616
  %v1618 = vrot.slane %v1617, 1
  %v1619 = vadd.f32 %v1617, %v1618
  %v1620 = vmul.f32 %v1619, 0.125
  %v1621 = vmul.f32 %v1620, %v1620
  %1623 = vrot.lane.b32.xlu0 %v1621, 35
  %v1624 = vpop.permute.xlu0 %1623
  %v1626 = vsub.f32 %v1620, %v1624
  %v1627 = vadd.f32 %v1626, 1e-05
  %v1628 = vrsqrt.pop %v1627
  %v1630 = vlaneseq
  %v1631 = vshrl.u32 %v1630, 7
  %v1632 = vsub.s32 0, %v1631
  %v1633 = vrot.slane %v1604, %v1632
  %1634 = vrot.lane.b32.xlu0 %v1633, 35
  %v1635 = vpop.permute.xlu0 %1634
  %v1637 = vmul.f32 %v1628, %v1635
  %1639 = vrot.lane.b32.xlu0 %v1637, 93
  %v1640 = vpop.permute.xlu0 %1639
  %v1642 = vmul.f32 %v1620, %v1640
  %v1643 = vsub.f32 %v1605, %v1642
  %v1644 = vlaneseq
  %v1645 = vshrl.u32 %v1644, 7
  %v1646 = vsub.s32 0, %v1645
  %v1647 = vrot.slane %v1637, %v1646
  %1649 = vrot.lane.b32.xlu0 %v1647, 93
  %v1650 = vpop.permute.xlu0 %1649
  %v1652 = vmul.f32 %v1603, %v1650
  %v1654 = vlaneseq
  %v1655 = vshrl.u32 %v1654, 7
  %v1656 = vsub.s32 0, %v1655
  %v1657 = vrot.slane %v1643, %v1656
  %v1659 = vadd.f32 %v1652, %v1657
  %v1660 = vadd.f32 %v1659, %v1520
  %v1661 = vpack.c.bf16 %v1660, %v1660
  %s1662 = scalar_lea.vmem %s12, 20
  %v1663 = vld [vmem:[%s1662] sm:$0xf]
  %v1664 = vld [vmem:[%s1662 + $0x4] sm:$0xf]
  %v1665 = vld [vmem:[%s1662 + $0x8] sm:$0xf]
  %v1666 = vld [vmem:[%s1662 + $0xc] sm:$0xf]
  %v1667 = vld [vmem:[%s1662 + $0x10] sm:$0x3]
  %s1668 = scalar_lea.vmem %s13, 1
  %v1669 = vld [vmem:[%s1668] sm:$0x1]
  %v1671 = vlaneseq
  %v1672 = vshrl.u32 %v1671, 7
  %v1673 = vsub.s32 0, %v1672
  %v1674 = vrot.slane %v1669, %v1673
  %v1681 = vunpack.c.l.b16 %v1663
  %v1682 = vunpack.c.l.b16 %v1664
  %v1683 = vunpack.c.l.b16 %v1665
  %v1684 = vunpack.c.l.b16 %v1666
  %v1685 = vunpack.c.l.b16 %v1667
  %v1686 = vpack.c.b16 %v1682, %v1681
  %v1687 = vpack.c.b16 %v1684, %v1683
  %v1688 = vpack.c.b16 %v1685, %v1685
  %v1692 = vsel %vm1476, %v1661, 0
  %v1695 = vand.u32 %v1688, %v1559
  %1697 = vmatprep.subr.bf16.mxu0 0
  %1698 = vmatpush1.bf16.msra.mxu0 %v1686
  %1699 = vmatprep.subr.bf16.mxu0 0
  %1700 = vmatpush1.bf16.msra.mxu0 %v1687
  %1701 = vmatprep.subr.bf16.mxu0 0
  %1702 = vmatpush1.bf16.msra.mxu0 %v1695
  %1703 = vmatprep.subr.bf16.mxu0 0
  %1704 = vmatpush1.bf16.msra.mxu0 0
  %1705 = vmatprep.subr.bf16.mxu0 0
  %1706 = vmatpush1.bf16.msra.mxu0 0
  %1707 = vmatprep.subr.bf16.mxu0 0
  %1708 = vmatpush1.bf16.msra.mxu0 0
  %1709 = vmatprep.subr.bf16.mxu0 0
  %1710 = vmatpush1.bf16.msra.mxu0 0
  %1711 = vmatprep.subr.bf16.mxu0 0
  %1712 = vmatpush1.bf16.msra.mxu0 0
  %1713 = vmatprep.subr.bf16.mxu0 0
  %1714 = vmatpush1.bf16.msra.mxu0 0
  %1715 = vmatprep.subr.bf16.mxu0 0
  %1716 = vmatpush1.bf16.msra.mxu0 0
  %1717 = vmatprep.subr.bf16.mxu0 0
  %1718 = vmatpush1.bf16.msra.mxu0 0
  %1719 = vmatprep.subr.bf16.mxu0 0
  %1720 = vmatpush1.bf16.msra.mxu0 0
  %1721 = vmatprep.subr.bf16.mxu0 0
  %1722 = vmatpush1.bf16.msra.mxu0 0
  %1723 = vmatprep.subr.bf16.mxu0 0
  %1724 = vmatpush1.bf16.msra.mxu0 0
  %1725 = vmatprep.subr.bf16.mxu0 0
  %1726 = vmatpush1.bf16.msra.mxu0 0
  %1727 = vmatprep.subr.bf16.mxu0 0
  %1728 = vmatpush1.bf16.msra.mxu0 0
  %1729 = vmatprep.mubr.bf16.mxu0 0
  %1730 = vmatmul.mubr.bf16.gmra.mrb[0].mxu0 %v1692
  %v1731 = vpop.f32.mrb[0].mxu0
  %v1732 = vadd.f32 %v1674, %v1731
  %v1733 = vpop.f32.mrb[0].mxu0
  %v1734 = vpop.f32.mrb[0].mxu0
  %v1735 = vpop.f32.mrb[0].mxu0
  %1736 = vdwg.mxu0
  %v1737 = vmax.f32 %v1732, 0.0
  %s1738 = scalar_lea.vmem %s14, 1
  %v1739 = vld [vmem:[%s1738] sm:$0x1]
  %s1740 = scalar_lea.vmem %s15, 1
  %v1741 = vld [vmem:[%s1740] sm:$0x1]
  %v1742 = vmul.f32 %v1737, %v1737
  %1744 = vrot.lane.b32.xlu0 %v1742, 35
  %v1745 = vpop.permute.xlu0 %1744
  %v1747 = vsel %vm1476, %v1737, %v1745
  %v1748 = vsel %vm1612, %v1747, 0.0
  %v1749 = vrot.slane %v1748, 4
  %v1750 = vadd.f32 %v1748, %v1749
  %v1751 = vrot.slane %v1750, 2
  %v1752 = vadd.f32 %v1750, %v1751
  %v1753 = vrot.slane %v1752, 1
  %v1754 = vadd.f32 %v1752, %v1753
  %v1755 = vmul.f32 %v1754, 0.125
  %v1756 = vmul.f32 %v1755, %v1755
  %1758 = vrot.lane.b32.xlu0 %v1756, 35
  %v1759 = vpop.permute.xlu0 %1758
  %v1761 = vsub.f32 %v1755, %v1759
  %v1762 = vadd.f32 %v1761, 1e-05
  %v1763 = vrsqrt.pop %v1762
  %v1765 = vlaneseq
  %v1766 = vshrl.u32 %v1765, 7
  %v1767 = vsub.s32 0, %v1766
  %v1768 = vrot.slane %v1739, %v1767
  %1769 = vrot.lane.b32.xlu0 %v1768, 35
  %v1770 = vpop.permute.xlu0 %1769
  %v1772 = vmul.f32 %v1763, %v1770
  %1774 = vrot.lane.b32.xlu0 %v1772, 93
  %v1775 = vpop.permute.xlu0 %1774
  %v1777 = vmul.f32 %v1755, %v1775
  %v1778 = vsub.f32 %v1741, %v1777
  %v1779 = vlaneseq
  %v1780 = vshrl.u32 %v1779, 7
  %v1781 = vsub.s32 0, %v1780
  %v1782 = vrot.slane %v1772, %v1781
  %1784 = vrot.lane.b32.xlu0 %v1782, 93
  %v1785 = vpop.permute.xlu0 %1784
  %v1787 = vmul.f32 %v1737, %v1785
  %v1789 = vlaneseq
  %v1790 = vshrl.u32 %v1789, 7
  %v1791 = vsub.s32 0, %v1790
  %v1792 = vrot.slane %v1778, %v1791
  %v1794 = vadd.f32 %v1787, %v1792
  %v1795 = vadd.f32 %v1794, %v1660
  %v1796 = vpack.c.bf16 %v1795, %v1795
  %s1797 = scalar_lea.vmem %s12, 40
  %v1798 = vld [vmem:[%s1797] sm:$0xf]
  %v1799 = vld [vmem:[%s1797 + $0x4] sm:$0xf]
  %v1800 = vld [vmem:[%s1797 + $0x8] sm:$0xf]
  %v1801 = vld [vmem:[%s1797 + $0xc] sm:$0xf]
  %v1802 = vld [vmem:[%s1797 + $0x10] sm:$0x3]
  %s1803 = scalar_lea.vmem %s13, 2
  %v1804 = vld [vmem:[%s1803] sm:$0x1]
  %v1806 = vlaneseq
  %v1807 = vshrl.u32 %v1806, 7
  %v1808 = vsub.s32 0, %v1807
  %v1809 = vrot.slane %v1804, %v1808
  %v1816 = vunpack.c.l.b16 %v1798
  %v1817 = vunpack.c.l.b16 %v1799
  %v1818 = vunpack.c.l.b16 %v1800
  %v1819 = vunpack.c.l.b16 %v1801
  %v1820 = vunpack.c.l.b16 %v1802
  %v1821 = vpack.c.b16 %v1817, %v1816
  %v1822 = vpack.c.b16 %v1819, %v1818
  %v1823 = vpack.c.b16 %v1820, %v1820
  %v1827 = vsel %vm1476, %v1796, 0
  %v1830 = vand.u32 %v1823, %v1559
  %1832 = vmatprep.subr.bf16.mxu0 0
  %1833 = vmatpush1.bf16.msra.mxu0 %v1821
  %1834 = vmatprep.subr.bf16.mxu0 0
  %1835 = vmatpush1.bf16.msra.mxu0 %v1822
  %1836 = vmatprep.subr.bf16.mxu0 0
  %1837 = vmatpush1.bf16.msra.mxu0 %v1830
  %1838 = vmatprep.subr.bf16.mxu0 0
  %1839 = vmatpush1.bf16.msra.mxu0 0
  %1840 = vmatprep.subr.bf16.mxu0 0
  %1841 = vmatpush1.bf16.msra.mxu0 0
  %1842 = vmatprep.subr.bf16.mxu0 0
  %1843 = vmatpush1.bf16.msra.mxu0 0
  %1844 = vmatprep.subr.bf16.mxu0 0
  %1845 = vmatpush1.bf16.msra.mxu0 0
  %1846 = vmatprep.subr.bf16.mxu0 0
  %1847 = vmatpush1.bf16.msra.mxu0 0
  %1848 = vmatprep.subr.bf16.mxu0 0
  %1849 = vmatpush1.bf16.msra.mxu0 0
  %1850 = vmatprep.subr.bf16.mxu0 0
  %1851 = vmatpush1.bf16.msra.mxu0 0
  %1852 = vmatprep.subr.bf16.mxu0 0
  %1853 = vmatpush1.bf16.msra.mxu0 0
  %1854 = vmatprep.subr.bf16.mxu0 0
  %1855 = vmatpush1.bf16.msra.mxu0 0
  %1856 = vmatprep.subr.bf16.mxu0 0
  %1857 = vmatpush1.bf16.msra.mxu0 0
  %1858 = vmatprep.subr.bf16.mxu0 0
  %1859 = vmatpush1.bf16.msra.mxu0 0
  %1860 = vmatprep.subr.bf16.mxu0 0
  %1861 = vmatpush1.bf16.msra.mxu0 0
  %1862 = vmatprep.subr.bf16.mxu0 0
  %1863 = vmatpush1.bf16.msra.mxu0 0
  %1864 = vmatprep.mubr.bf16.mxu0 0
  %1865 = vmatmul.mubr.bf16.gmra.mrb[0].mxu0 %v1827
  %v1866 = vpop.f32.mrb[0].mxu0
  %v1867 = vadd.f32 %v1809, %v1866
  %v1868 = vpop.f32.mrb[0].mxu0
  %v1869 = vpop.f32.mrb[0].mxu0
  %v1870 = vpop.f32.mrb[0].mxu0
  %1871 = vdwg.mxu0
  %v1872 = vmax.f32 %v1867, 0.0
  %s1873 = scalar_lea.vmem %s14, 2
  %v1874 = vld [vmem:[%s1873] sm:$0x1]
  %s1875 = scalar_lea.vmem %s15, 2
  %v1876 = vld [vmem:[%s1875] sm:$0x1]
  %v1877 = vmul.f32 %v1872, %v1872
  %1879 = vrot.lane.b32.xlu0 %v1877, 35
  %v1880 = vpop.permute.xlu0 %1879
  %v1882 = vsel %vm1476, %v1872, %v1880
  %v1883 = vsel %vm1612, %v1882, 0.0
  %v1884 = vrot.slane %v1883, 4
  %v1885 = vadd.f32 %v1883, %v1884
  %v1886 = vrot.slane %v1885, 2
  %v1887 = vadd.f32 %v1885, %v1886
  %v1888 = vrot.slane %v1887, 1
  %v1889 = vadd.f32 %v1887, %v1888
  %v1890 = vmul.f32 %v1889, 0.125
  %v1891 = vmul.f32 %v1890, %v1890
  %1893 = vrot.lane.b32.xlu0 %v1891, 35
  %v1894 = vpop.permute.xlu0 %1893
  %v1896 = vsub.f32 %v1890, %v1894
  %v1897 = vadd.f32 %v1896, 1e-05
  %v1898 = vrsqrt.pop %v1897
  %v1900 = vlaneseq
  %v1901 = vshrl.u32 %v1900, 7
  %v1902 = vsub.s32 0, %v1901
  %v1903 = vrot.slane %v1874, %v1902
  %1904 = vrot.lane.b32.xlu0 %v1903, 35
  %v1905 = vpop.permute.xlu0 %1904
  %v1907 = vmul.f32 %v1898, %v1905
  %1909 = vrot.lane.b32.xlu0 %v1907, 93
  %v1910 = vpop.permute.xlu0 %1909
  %v1912 = vmul.f32 %v1890, %v1910
  %v1913 = vsub.f32 %v1876, %v1912
  %v1914 = vlaneseq
  %v1915 = vshrl.u32 %v1914, 7
  %v1916 = vsub.s32 0, %v1915
  %v1917 = vrot.slane %v1907, %v1916
  %1919 = vrot.lane.b32.xlu0 %v1917, 93
  %v1920 = vpop.permute.xlu0 %1919
  %v1922 = vmul.f32 %v1872, %v1920
  %v1924 = vlaneseq
  %v1925 = vshrl.u32 %v1924, 7
  %v1926 = vsub.s32 0, %v1925
  %v1927 = vrot.slane %v1913, %v1926
  %v1929 = vadd.f32 %v1922, %v1927
  %v1930 = vadd.f32 %v1929, %v1795
  %v1931 = vpack.c.bf16 %v1930, %v1930
  %s1932 = scalar_lea.vmem %s12, 60
  %v1933 = vld [vmem:[%s1932] sm:$0xf]
  %v1934 = vld [vmem:[%s1932 + $0x4] sm:$0xf]
  %v1935 = vld [vmem:[%s1932 + $0x8] sm:$0xf]
  %v1936 = vld [vmem:[%s1932 + $0xc] sm:$0xf]
  %v1937 = vld [vmem:[%s1932 + $0x10] sm:$0x3]
  %s1938 = scalar_lea.vmem %s13, 3
  %v1939 = vld [vmem:[%s1938] sm:$0x1]
  %v1941 = vlaneseq
  %v1942 = vshrl.u32 %v1941, 7
  %v1943 = vsub.s32 0, %v1942
  %v1944 = vrot.slane %v1939, %v1943
  %v1951 = vunpack.c.l.b16 %v1933
  %v1952 = vunpack.c.l.b16 %v1934
  %v1953 = vunpack.c.l.b16 %v1935
  %v1954 = vunpack.c.l.b16 %v1936
  %v1955 = vunpack.c.l.b16 %v1937
  %v1956 = vpack.c.b16 %v1952, %v1951
  %v1957 = vpack.c.b16 %v1954, %v1953
  %v1958 = vpack.c.b16 %v1955, %v1955
  %v1962 = vsel %vm1476, %v1931, 0
  %v1965 = vand.u32 %v1958, %v1559
  %1967 = vmatprep.subr.bf16.mxu0 0
  %1968 = vmatpush1.bf16.msra.mxu0 %v1956
  %1969 = vmatprep.subr.bf16.mxu0 0
  %1970 = vmatpush1.bf16.msra.mxu0 %v1957
  %1971 = vmatprep.subr.bf16.mxu0 0
  %1972 = vmatpush1.bf16.msra.mxu0 %v1965
  %1973 = vmatprep.subr.bf16.mxu0 0
  %1974 = vmatpush1.bf16.msra.mxu0 0
  %1975 = vmatprep.subr.bf16.mxu0 0
  %1976 = vmatpush1.bf16.msra.mxu0 0
  %1977 = vmatprep.subr.bf16.mxu0 0
  %1978 = vmatpush1.bf16.msra.mxu0 0
  %1979 = vmatprep.subr.bf16.mxu0 0
  %1980 = vmatpush1.bf16.msra.mxu0 0
  %1981 = vmatprep.subr.bf16.mxu0 0
  %1982 = vmatpush1.bf16.msra.mxu0 0
  %1983 = vmatprep.subr.bf16.mxu0 0
  %1984 = vmatpush1.bf16.msra.mxu0 0
  %1985 = vmatprep.subr.bf16.mxu0 0
  %1986 = vmatpush1.bf16.msra.mxu0 0
  %1987 = vmatprep.subr.bf16.mxu0 0
  %1988 = vmatpush1.bf16.msra.mxu0 0
  %1989 = vmatprep.subr.bf16.mxu0 0
  %1990 = vmatpush1.bf16.msra.mxu0 0
  %1991 = vmatprep.subr.bf16.mxu0 0
  %1992 = vmatpush1.bf16.msra.mxu0 0
  %1993 = vmatprep.subr.bf16.mxu0 0
  %1994 = vmatpush1.bf16.msra.mxu0 0
  %1995 = vmatprep.subr.bf16.mxu0 0
  %1996 = vmatpush1.bf16.msra.mxu0 0
  %1997 = vmatprep.subr.bf16.mxu0 0
  %1998 = vmatpush1.bf16.msra.mxu0 0
  %1999 = vmatprep.mubr.bf16.mxu0 0
  %2000 = vmatmul.mubr.bf16.gmra.mrb[0].mxu0 %v1962
  %v2001 = vpop.f32.mrb[0].mxu0
  %v2002 = vadd.f32 %v1944, %v2001
  %v2003 = vpop.f32.mrb[0].mxu0
  %v2004 = vpop.f32.mrb[0].mxu0
  %v2005 = vpop.f32.mrb[0].mxu0
  %2006 = vdwg.mxu0
  %v2007 = vmax.f32 %v2002, 0.0
  %s2008 = scalar_lea.vmem %s14, 3
  %v2009 = vld [vmem:[%s2008] sm:$0x1]
  %s2010 = scalar_lea.vmem %s15, 3
  %v2011 = vld [vmem:[%s2010] sm:$0x1]
  %v2012 = vmul.f32 %v2007, %v2007
  %2014 = vrot.lane.b32.xlu0 %v2012, 35
  %v2015 = vpop.permute.xlu0 %2014
  %v2017 = vsel %vm1476, %v2007, %v2015
  %v2018 = vsel %vm1612, %v2017, 0.0
  %v2019 = vrot.slane %v2018, 4
  %v2020 = vadd.f32 %v2018, %v2019
  %v2021 = vrot.slane %v2020, 2
  %v2022 = vadd.f32 %v2020, %v2021
  %v2023 = vrot.slane %v2022, 1
  %v2024 = vadd.f32 %v2022, %v2023
  %v2025 = vmul.f32 %v2024, 0.125
  %v2026 = vmul.f32 %v2025, %v2025
  %2028 = vrot.lane.b32.xlu0 %v2026, 35
  %v2029 = vpop.permute.xlu0 %2028
  %v2031 = vsub.f32 %v2025, %v2029
  %v2032 = vadd.f32 %v2031, 1e-05
  %v2033 = vrsqrt.pop %v2032
  %v2035 = vlaneseq
  %v2036 = vshrl.u32 %v2035, 7
  %v2037 = vsub.s32 0, %v2036
  %v2038 = vrot.slane %v2009, %v2037
  %2039 = vrot.lane.b32.xlu0 %v2038, 35
  %v2040 = vpop.permute.xlu0 %2039
  %v2042 = vmul.f32 %v2033, %v2040
  %2044 = vrot.lane.b32.xlu0 %v2042, 93
  %v2045 = vpop.permute.xlu0 %2044
  %v2047 = vmul.f32 %v2025, %v2045
  %v2048 = vsub.f32 %v2011, %v2047
  %v2049 = vlaneseq
  %v2050 = vshrl.u32 %v2049, 7
  %v2051 = vsub.s32 0, %v2050
  %v2052 = vrot.slane %v2042, %v2051
  %2054 = vrot.lane.b32.xlu0 %v2052, 93
  %v2055 = vpop.permute.xlu0 %2054
  %v2057 = vmul.f32 %v2007, %v2055
  %v2059 = vlaneseq
  %v2060 = vshrl.u32 %v2059, 7
  %v2061 = vsub.s32 0, %v2060
  %v2062 = vrot.slane %v2048, %v2061
  %v2064 = vadd.f32 %v2057, %v2062
  %v2065 = vadd.f32 %v2064, %v1930
  %v2066 = vpack.c.bf16 %v2065, %v2065
  %s2067 = scalar_lea.vmem %s12, 80
  %v2068 = vld [vmem:[%s2067] sm:$0xf]
  %v2069 = vld [vmem:[%s2067 + $0x4] sm:$0xf]
  %v2070 = vld [vmem:[%s2067 + $0x8] sm:$0xf]
  %v2071 = vld [vmem:[%s2067 + $0xc] sm:$0xf]
  %v2072 = vld [vmem:[%s2067 + $0x10] sm:$0x3]
  %s2073 = scalar_lea.vmem %s13, 4
  %v2074 = vld [vmem:[%s2073] sm:$0x1]
  %v2076 = vlaneseq
  %v2077 = vshrl.u32 %v2076, 7
  %v2078 = vsub.s32 0, %v2077
  %v2079 = vrot.slane %v2074, %v2078
  %v2086 = vunpack.c.l.b16 %v2068
  %v2087 = vunpack.c.l.b16 %v2069
  %v2088 = vunpack.c.l.b16 %v2070
  %v2089 = vunpack.c.l.b16 %v2071
  %v2090 = vunpack.c.l.b16 %v2072
  %v2091 = vpack.c.b16 %v2087, %v2086
  %v2092 = vpack.c.b16 %v2089, %v2088
  %v2093 = vpack.c.b16 %v2090, %v2090
  %v2097 = vsel %vm1476, %v2066, 0
  %v2100 = vand.u32 %v2093, %v1559
  %2102 = vmatprep.subr.bf16.mxu0 0
  %2103 = vmatpush1.bf16.msra.mxu0 %v2091
  %2104 = vmatprep.subr.bf16.mxu0 0
  %2105 = vmatpush1.bf16.msra.mxu0 %v2092
  %2106 = vmatprep.subr.bf16.mxu0 0
  %2107 = vmatpush1.bf16.msra.mxu0 %v2100
  %2108 = vmatprep.subr.bf16.mxu0 0
  %2109 = vmatpush1.bf16.msra.mxu0 0
  %2110 = vmatprep.subr.bf16.mxu0 0
  %2111 = vmatpush1.bf16.msra.mxu0 0
  %2112 = vmatprep.subr.bf16.mxu0 0
  %2113 = vmatpush1.bf16.msra.mxu0 0
  %2114 = vmatprep.subr.bf16.mxu0 0
  %2115 = vmatpush1.bf16.msra.mxu0 0
  %2116 = vmatprep.subr.bf16.mxu0 0
  %2117 = vmatpush1.bf16.msra.mxu0 0
  %2118 = vmatprep.subr.bf16.mxu0 0
  %2119 = vmatpush1.bf16.msra.mxu0 0
  %2120 = vmatprep.subr.bf16.mxu0 0
  %2121 = vmatpush1.bf16.msra.mxu0 0
  %2122 = vmatprep.subr.bf16.mxu0 0
  %2123 = vmatpush1.bf16.msra.mxu0 0
  %2124 = vmatprep.subr.bf16.mxu0 0
  %2125 = vmatpush1.bf16.msra.mxu0 0
  %2126 = vmatprep.subr.bf16.mxu0 0
  %2127 = vmatpush1.bf16.msra.mxu0 0
  %2128 = vmatprep.subr.bf16.mxu0 0
  %2129 = vmatpush1.bf16.msra.mxu0 0
  %2130 = vmatprep.subr.bf16.mxu0 0
  %2131 = vmatpush1.bf16.msra.mxu0 0
  %2132 = vmatprep.subr.bf16.mxu0 0
  %2133 = vmatpush1.bf16.msra.mxu0 0
  %2134 = vmatprep.mubr.bf16.mxu0 0
  %2135 = vmatmul.mubr.bf16.gmra.mrb[0].mxu0 %v2097
  %v2136 = vpop.f32.mrb[0].mxu0
  %v2137 = vadd.f32 %v2079, %v2136
  %v2138 = vpop.f32.mrb[0].mxu0
  %v2139 = vpop.f32.mrb[0].mxu0
  %v2140 = vpop.f32.mrb[0].mxu0
  %2141 = vdwg.mxu0
  %v2142 = vmax.f32 %v2137, 0.0
  %s2143 = scalar_lea.vmem %s14, 4
  %v2144 = vld [vmem:[%s2143] sm:$0x1]
  %s2145 = scalar_lea.vmem %s15, 4
  %v2146 = vld [vmem:[%s2145] sm:$0x1]
  %v2147 = vmul.f32 %v2142, %v2142
  %2149 = vrot.lane.b32.xlu0 %v2147, 35
  %v2150 = vpop.permute.xlu0 %2149
  %v2152 = vsel %vm1476, %v2142, %v2150
  %v2153 = vsel %vm1612, %v2152, 0.0
  %v2154 = vrot.slane %v2153, 4
  %v2155 = vadd.f32 %v2153, %v2154
  %v2156 = vrot.slane %v2155, 2
  %v2157 = vadd.f32 %v2155, %v2156
  %v2158 = vrot.slane %v2157, 1
  %v2159 = vadd.f32 %v2157, %v2158
  %v2160 = vmul.f32 %v2159, 0.125
  %v2161 = vmul.f32 %v2160, %v2160
  %2163 = vrot.lane.b32.xlu0 %v2161, 35
  %v2164 = vpop.permute.xlu0 %2163
  %v2166 = vsub.f32 %v2160, %v2164
  %v2167 = vadd.f32 %v2166, 1e-05
  %v2168 = vrsqrt.pop %v2167
  %v2170 = vlaneseq
  %v2171 = vshrl.u32 %v2170, 7
  %v2172 = vsub.s32 0, %v2171
  %v2173 = vrot.slane %v2144, %v2172
  %2174 = vrot.lane.b32.xlu0 %v2173, 35
  %v2175 = vpop.permute.xlu0 %2174
  %v2177 = vmul.f32 %v2168, %v2175
  %2179 = vrot.lane.b32.xlu0 %v2177, 93
  %v2180 = vpop.permute.xlu0 %2179
  %v2182 = vmul.f32 %v2160, %v2180
  %v2183 = vsub.f32 %v2146, %v2182
  %v2184 = vlaneseq
  %v2185 = vshrl.u32 %v2184, 7
  %v2186 = vsub.s32 0, %v2185
  %v2187 = vrot.slane %v2177, %v2186
  %2189 = vrot.lane.b32.xlu0 %v2187, 93
  %v2190 = vpop.permute.xlu0 %2189
  %v2192 = vmul.f32 %v2142, %v2190
  %v2194 = vlaneseq
  %v2195 = vshrl.u32 %v2194, 7
  %v2196 = vsub.s32 0, %v2195
  %v2197 = vrot.slane %v2183, %v2196
  %v2199 = vadd.f32 %v2192, %v2197
  %v2200 = vadd.f32 %v2199, %v2065
  %v2201 = vld [vmem:[%s16] sm:$0xff]
  %v2202 = vld [vmem:[%s16 + $0x8] sm:$0xff]
  %v2203 = vld [vmem:[%s16 + $0x10] sm:$0xff]
  %v2204 = vld [vmem:[%s16 + $0x18] sm:$0xff]
  %v2205 = vld [vmem:[%s16 + $0x20] sm:$0x7]
  %v2206 = vld [vmem:[#allocation2] sm:$0x1]
  %v2208 = vlaneseq
  %v2209 = vshrl.u32 %v2208, 7
  %v2210 = vsub.s32 0, %v2209
  %v2211 = vrot.slane %v2206, %v2210
  %v2214 = vsel %vm1476, %v2200, 0
  %v2217 = vsel %vm107, %v2205, 0
  %2219 = vmatprep.subr.mxu0 0.0
  %2220 = vmatpush1.msra.mxu0 %v2201
  %2221 = vmatprep.subr.mxu0 0.0
  %2222 = vmatpush1.msra.mxu0 %v2202
  %2223 = vmatprep.subr.mxu0 0.0
  %2224 = vmatpush1.msra.mxu0 %v2203
  %2225 = vmatprep.subr.mxu0 0.0
  %2226 = vmatpush1.msra.mxu0 %v2204
  %2227 = vmatprep.subr.mxu0 0.0
  %2228 = vmatpush1.msra.mxu0 %v2217
  %2229 = vmatprep.subr.mxu0 0.0
  %2230 = vmatpush1.msra.mxu0 0.0
  %2231 = vmatprep.subr.mxu0 0.0
  %2232 = vmatpush1.msra.mxu0 0.0
  %2233 = vmatprep.subr.mxu0 0.0
  %2234 = vmatpush1.msra.mxu0 0.0
  %2235 = vmatprep.subr.mxu0 0.0
  %2236 = vmatpush1.msra.mxu0 0.0
  %2237 = vmatprep.subr.mxu0 0.0
  %2238 = vmatpush1.msra.mxu0 0.0
  %2239 = vmatprep.subr.mxu0 0.0
  %2240 = vmatpush1.msra.mxu0 0.0
  %2241 = vmatprep.subr.mxu0 0.0
  %2242 = vmatpush1.msra.mxu0 0.0
  %2243 = vmatprep.subr.mxu0 0.0
  %2244 = vmatpush1.msra.mxu0 0.0
  %2245 = vmatprep.subr.mxu0 0.0
  %2246 = vmatpush1.msra.mxu0 0.0
  %2247 = vmatprep.subr.mxu0 0.0
  %2248 = vmatpush1.msra.mxu0 0.0
  %2249 = vmatprep.subr.mxu0 0.0
  %2250 = vmatpush1.msra.mxu0 0.0
  %2251 = vmatprep.subr.mxu0 0.0
  %2252 = vmatpush1.msra.mxu0 0.0
  %2253 = vmatprep.subr.mxu0 0.0
  %2254 = vmatpush1.msra.mxu0 0.0
  %2255 = vmatprep.subr.mxu0 0.0
  %2256 = vmatpush1.msra.mxu0 0.0
  %2257 = vmatprep.subr.mxu0 0.0
  %2258 = vmatpush1.msra.mxu0 0.0
  %2259 = vmatprep.subr.mxu0 0.0
  %2260 = vmatpush1.msra.mxu0 0.0
  %2261 = vmatprep.subr.mxu0 0.0
  %2262 = vmatpush1.msra.mxu0 0.0
  %2263 = vmatprep.subr.mxu0 0.0
  %2264 = vmatpush1.msra.mxu0 0.0
  %2265 = vmatprep.subr.mxu0 0.0
  %2266 = vmatpush1.msra.mxu0 0.0
  %2267 = vmatprep.subr.mxu0 0.0
  %2268 = vmatpush1.msra.mxu0 0.0
  %2269 = vmatprep.subr.mxu0 0.0
  %2270 = vmatpush1.msra.mxu0 0.0
  %2271 = vmatprep.subr.mxu0 0.0
  %2272 = vmatpush1.msra.mxu0 0.0
  %2273 = vmatprep.subr.mxu0 0.0
  %2274 = vmatpush1.msra.mxu0 0.0
  %2275 = vmatprep.subr.mxu0 0.0
  %2276 = vmatpush1.msra.mxu0 0.0
  %2277 = vmatprep.subr.mxu0 0.0
  %2278 = vmatpush1.msra.mxu0 0.0
  %2279 = vmatprep.subr.mxu0 0.0
  %2280 = vmatpush1.msra.mxu0 0.0
  %2281 = vmatprep.subr.mxu0 0.0
  %2282 = vmatpush1.msra.mxu0 0.0
  %2283 = vmatprep.mubr.f32.mxu0 0.0
  %2284 = vmatmul.mubr.f32.gmra.mrb[0].mxu0 %v2214
  %v2285 = vpop.f32.mrb[0].mxu0
  %v2286 = vadd.f32 %v2211, %v2285
  %v2287 = vpop.f32.mrb[0].mxu0
  %2288 = vdwg.mxu0
  %v2289 = vxor.u32 %v2286, 2147483648
  %v2290 = vmul.f32 %v2289, 1.442695
  %v2291 = vpow.pop %v2290
  %v2292 = vadd.f32 %v2291, 1.0
  %v2293 = vrcp.pop %v2292
  %v2294 = vmul.f32 1.0, %v2293
  %vm2295 = vcmask 7168
  %2296 = vst.msk [vmem:[%s18] sm:$0xff] %vm2295, %v2294
  // Predicated region
  $region74: #{event_predictor_forward.1} parent=0 // pred_check
    _
  $region75: #{event_predictor_forward.1} parent=0 // pred_check_branch
    %2298 = sbr.rel (0) target = $region77
  $region76: #{event_predictor_forward.1} parent=0 // pred_region
    _
  $region77: #{event_predictor_forward.1} parent=0 // pred_fallthru
    _
  // Predicated region
  $region78: #{event_predictor_forward.1} parent=0 // pred_check
    _
  $region79: #{event_predictor_forward.1} parent=0 // pred_check_branch
    %2300 = sbr.rel (0) target = $region81
  $region80: #{event_predictor_forward.1} parent=0 // pred_region
    _
  $region81: #{event_predictor_forward.1} parent=0 // pred_fallthru
    _

</llo_original>
